<compile_context>
chip_gen: v5e
topology: v5e:2x2
jax: 0.10.0
libtpu: 0.0.40
codegen_flags: <defaults>
</compile_context>

<pallas_src>
import functools

import jax
import jax.numpy as jnp
from jax.experimental import pallas as pl
from jax.experimental.pallas import tpu as pltpu

LANE = 128
SUBLANE = 8


# ------------------------------ small helpers -------------------------------

def _round_up(x, m):
    return (x + m - 1) // m * m


def _pick_tile(m, max_tile=512, align=SUBLANE):
    """Row tile: whole problem if small, else a fixed aligned tile."""
    if m <= max_tile:
        return _round_up(m, align)
    return max_tile


def _pad2d(a, rows, cols):
    r, c = a.shape
    return jnp.pad(a, ((0, rows - r), (0, cols - c)))


# ------------------------------ Pallas kernels ------------------------------

def _conv_pool_relu_kernel(x_ref, w_ref, b_ref, o_ref):
    # x_ref: (4, TILE_M, Kp)  -- the four 2x2 pool-window corners of the im2col
    #                            patch matrix for TILE_M pooled output positions.
    # w_ref: (Kp, Cp)  b_ref: (1, Cp)  o_ref: (TILE_M, Cp)
    w = w_ref[...]
    d0 = jnp.dot(x_ref[0], w, preferred_element_type=jnp.float32)
    d1 = jnp.dot(x_ref[1], w, preferred_element_type=jnp.float32)
    d2 = jnp.dot(x_ref[2], w, preferred_element_type=jnp.float32)
    d3 = jnp.dot(x_ref[3], w, preferred_element_type=jnp.float32)
    pooled = jnp.maximum(jnp.maximum(d0, d1), jnp.maximum(d2, d3))
    o_ref[...] = jnp.maximum(pooled + b_ref[...], 0.0)


def _fc_relu_logsoftmax_kernel(x_ref, w_ref, b_ref, o_ref, *, n_valid_cols):
    # (TILE_N, K) @ (K, Fp) + (1, Fp) -> ReLU -> mask padded cols -> log_softmax.
    h = jnp.dot(x_ref[...], w_ref[...], preferred_element_type=jnp.float32) + b_ref[...]
    h = jnp.maximum(h, 0.0)
    col = jax.lax.broadcasted_iota(jnp.int32, h.shape, 1)
    h = jnp.where(col < n_valid_cols, h, -1e30)       # padded logits -> ~-inf
    m = jnp.max(h, axis=-1, keepdims=True)
    lse = jnp.log(jnp.sum(jnp.exp(h - m), axis=-1, keepdims=True)) + m
    o_ref[...] = h - lse


# ------------------------------ pallas_call wrappers -------------------------

def conv_pool_relu(x_nhwc, w, b, *, max_tile=512):
    """Fused: relu(max_pool2d(conv2d_valid(x) + b, 2)).

    x_nhwc: (N, H, W, Cin) f32;  w: (Cout, Cin, k, k);  b: (Cout,)
    Returns (N, OH//2, OW//2, Cp) with Cp = Cout padded to 128 (padding is 0).
    """
    N, H, W, Cin = x_nhwc.shape
    Cout, Cin_w, k, _ = w.shape
    assert Cin_w == Cin
    OH, OW = H - k + 1, W - k + 1
    PH, PW = OH // 2, OW // 2
    K = k * k * Cin
    Kp = _round_up(K, SUBLANE)
    Cp = _round_up(Cout, LANE)

    # im2col with patch-element order (dy, dx, c); group the four corners of each
    # 2x2 pooling window on a leading axis of size 4.
    slabs = [x_nhwc[:, dy:dy + OH, dx:dx + OW, :]
             for dy in range(k) for dx in range(k)]
    patches = jnp.stack(slabs, axis=3).reshape(N, OH, OW, K)
    patches = patches.reshape(N, PH, 2, PW, 2, K)
    patches = jnp.transpose(patches, (2, 4, 0, 1, 3, 5)).reshape(4, N * PH * PW, K)

    M = N * PH * PW
    tile = _pick_tile(M, max_tile=max_tile)
    Mp = _round_up(M, tile)
    patches = jnp.pad(patches, ((0, 0), (0, Mp - M), (0, Kp - K)))

    # Weight flattened in (dy, dx, c) order to match the patches; zero-padded.
    w2d = _pad2d(jnp.transpose(w, (2, 3, 1, 0)).reshape(K, Cout), Kp, Cp)
    b2d = _pad2d(b.reshape(1, Cout), 1, Cp)

    out = pl.pallas_call(
        _conv_pool_relu_kernel,
        out_shape=jax.ShapeDtypeStruct((Mp, Cp), jnp.float32),
        grid_spec=pltpu.PrefetchScalarGridSpec(
            num_scalar_prefetch=0,
            grid=(Mp // tile,),
            in_specs=[
                pl.BlockSpec((4, tile, Kp), lambda i: (0, i, 0)),
                pl.BlockSpec((Kp, Cp), lambda i: (0, 0)),
                pl.BlockSpec((1, Cp), lambda i: (0, 0)),
            ],
            out_specs=pl.BlockSpec((tile, Cp), lambda i: (i, 0)),
        ),
        compiler_params=pltpu.CompilerParams(
            dimension_semantics=("parallel",),
            vmem_limit_bytes=32 * 1024 * 1024,
        ),
    )(patches, w2d, b2d)

    return out[:M].reshape(N, PH, PW, Cp)


def fc_relu_logsoftmax(x, w, b, *, max_tile=256):
    """Fused: log_softmax(relu(x @ w + b), axis=-1).  x: (N, K), w: (K, F), b: (F,)."""
    N, K = x.shape
    F = w.shape[1]
    Fp = _round_up(F, LANE)
    tile = _pick_tile(N, max_tile=max_tile)
    Np = _round_up(N, tile)

    xp = _pad2d(x, Np, K)
    wp = _pad2d(w, K, Fp)
    bp = _pad2d(b.reshape(1, F), 1, Fp)

    out = pl.pallas_call(
        functools.partial(_fc_relu_logsoftmax_kernel, n_valid_cols=F),
        out_shape=jax.ShapeDtypeStruct((Np, Fp), jnp.float32),
        grid_spec=pltpu.PrefetchScalarGridSpec(
            num_scalar_prefetch=0,
            grid=(Np // tile,),
            in_specs=[
                pl.BlockSpec((tile, K), lambda i: (i, 0)),
                pl.BlockSpec((K, Fp), lambda i: (0, 0)),
                pl.BlockSpec((1, Fp), lambda i: (0, 0)),
            ],
            out_specs=pl.BlockSpec((tile, Fp), lambda i: (i, 0)),
        ),
        compiler_params=pltpu.CompilerParams(
            dimension_semantics=("parallel",),
            vmem_limit_bytes=32 * 1024 * 1024,
        ),
    )(xp, wp, bp)
    return out[:N, :F]


# ------------------------------ model ----------------------------------------

def init_params(key):
    k1, k2, k3, k4, k5, k6 = jax.random.split(key, 6)

    def uni(k, shape, fan_in):
        bound = 1.0 / jnp.sqrt(fan_in)
        return jax.random.uniform(k, shape, jnp.float32, -bound, bound)

    return {
        "conv1_w": uni(k1, (10, 1, 5, 5), 1 * 5 * 5),
        "conv1_b": uni(k2, (10,), 1 * 5 * 5),
        "conv2_w": uni(k3, (20, 10, 5, 5), 10 * 5 * 5),
        "conv2_b": uni(k4, (20,), 10 * 5 * 5),
        "fc1_w": uni(k5, (320, 50), 320),   # (in, out), rows in PyTorch (c,h,w) order
        "fc1_b": uni(k6, (50,), 320),
    }


def submodel_forward(params, x_nchw):
    # Single layout change at the boundary: NCHW -> NHWC (channels on lane axis).
    x = jnp.transpose(x_nchw, (0, 2, 3, 1)).astype(jnp.float32)

    # conv1 -> maxpool2 -> relu (fused):      (N,28,28,1) -> (N,12,12,128p)
    h = conv_pool_relu(x, params["conv1_w"], params["conv1_b"])

    # conv2 -> Dropout2d (eval identity) -> maxpool2 -> relu (fused):
    #                                          (N,12,12,10) -> (N,4,4,128p)
    h = conv_pool_relu(h[..., :10], params["conv2_w"], params["conv2_b"])

    # Flatten. PyTorch flattens NCHW as (c,h,w); our activation is NHWC, so we
    # permute the FC weight rows instead of transposing the activation.
    N = h.shape[0]
    feat = h[..., :20].reshape(N, 4 * 4 * 20)                       # (N, 320), (h,w,c) order
    w_fc = jnp.transpose(params["fc1_w"].reshape(20, 4, 4, 50),
                         (1, 2, 0, 3)).reshape(320, 50)             # rows -> (h,w,c)

    # fc1 -> relu -> dropout (eval identity) -> log_softmax (fused)
    return fc_relu_logsoftmax(feat, w_fc, params["fc1_b"])          # (N, 50)


if __name__ == "__main__":
    key = jax.random.PRNGKey(0)
    pkey, xkey = jax.random.split(key)
    params = init_params(pkey)
    # batch=2, MNIST-sized input (28x28 is implied by the 320-dim flatten).
    x = jax.random.normal(xkey, (2, 1, 28, 28), dtype=jnp.float32)

    out = jax.jit(submodel_forward)(params, x)
    out = jax.block_until_ready(out)

    assert out.shape == (2, 50)
    # log_softmax rows should exponentiate-and-sum to 1
    assert jnp.allclose(jnp.sum(jnp.exp(out), axis=-1), 1.0, atol=1e-4)
    print("KERNEL_OK")
</pallas_src>

<mosaic_0001>
module attributes {stable_mosaic.version = 11 : i64} {
  func.func @_conv_pool_relu_kernel(%arg0: i32, %arg1: memref<4x288x32xf32, #tpu.memory_space<vmem>>, %arg2: memref<32x128xf32, #tpu.memory_space<vmem>>, %arg3: memref<1x128xf32, #tpu.memory_space<vmem>>, %arg4: memref<288x128xf32, #tpu.memory_space<vmem>>) attributes {dimension_semantics = [#tpu.dimension_semantics<parallel>], iteration_bounds = array<i64: 1>, scalar_prefetch = 0 : i64, scratch_operands = 0 : i64, tpu.core_type = #tpu.core_type<tc>, window_params = [{transform_indices = @transform_0, window_bounds = array<i64: 4, 288, 32>}, {pipeline_mode = #tpu.pipeline_mode<synchronous>, transform_indices = @transform_1, window_bounds = array<i64: 32, 128>}, {pipeline_mode = #tpu.pipeline_mode<synchronous>, transform_indices = @transform_2, window_bounds = array<i64: 1, 128>}, {transform_indices = @transform_3, window_bounds = array<i64: 288, 128>}]} {
    %c0 = arith.constant 0 : index
    %c0_0 = arith.constant 0 : index
    %0 = vector.load %arg2[%c0, %c0_0] : memref<32x128xf32, #tpu.memory_space<vmem>>, vector<32x128xf32>
    %c0_1 = arith.constant 0 : index
    %c0_2 = arith.constant 0 : index
    %c0_3 = arith.constant 0 : index
    %1 = vector.load %arg1[%c0_1, %c0_2, %c0_3] : memref<4x288x32xf32, #tpu.memory_space<vmem>>, vector<1x288x32xf32>
    %2 = vector.shape_cast %1 : vector<1x288x32xf32> to vector<288x32xf32>
    %cst = arith.constant dense<0.000000e+00> : vector<288x128xf32>
    %3 = tpu.matmul %2, %0, %cst {dimension_numbers = #tpu.dot_dimension_numbers<[1], [0], [0], [1], [0, 0, 1, 1], [], []>} : vector<288x32xf32>, vector<32x128xf32>, vector<288x128xf32> -> vector<288x128xf32>
    %c1 = arith.constant 1 : index
    %c0_4 = arith.constant 0 : index
    %c0_5 = arith.constant 0 : index
    %4 = vector.load %arg1[%c1, %c0_4, %c0_5] : memref<4x288x32xf32, #tpu.memory_space<vmem>>, vector<1x288x32xf32>
    %5 = vector.shape_cast %4 : vector<1x288x32xf32> to vector<288x32xf32>
    %cst_6 = arith.constant dense<0.000000e+00> : vector<288x128xf32>
    %6 = tpu.matmul %5, %0, %cst_6 {dimension_numbers = #tpu.dot_dimension_numbers<[1], [0], [0], [1], [0, 0, 1, 1], [], []>} : vector<288x32xf32>, vector<32x128xf32>, vector<288x128xf32> -> vector<288x128xf32>
    %c2 = arith.constant 2 : index
    %c0_7 = arith.constant 0 : index
    %c0_8 = arith.constant 0 : index
    %7 = vector.load %arg1[%c2, %c0_7, %c0_8] : memref<4x288x32xf32, #tpu.memory_space<vmem>>, vector<1x288x32xf32>
    %8 = vector.shape_cast %7 : vector<1x288x32xf32> to vector<288x32xf32>
    %cst_9 = arith.constant dense<0.000000e+00> : vector<288x128xf32>
    %9 = tpu.matmul %8, %0, %cst_9 {dimension_numbers = #tpu.dot_dimension_numbers<[1], [0], [0], [1], [0, 0, 1, 1], [], []>} : vector<288x32xf32>, vector<32x128xf32>, vector<288x128xf32> -> vector<288x128xf32>
    %c3 = arith.constant 3 : index
    %c0_10 = arith.constant 0 : index
    %c0_11 = arith.constant 0 : index
    %10 = vector.load %arg1[%c3, %c0_10, %c0_11] : memref<4x288x32xf32, #tpu.memory_space<vmem>>, vector<1x288x32xf32>
    %11 = vector.shape_cast %10 : vector<1x288x32xf32> to vector<288x32xf32>
    %cst_12 = arith.constant dense<0.000000e+00> : vector<288x128xf32>
    %12 = tpu.matmul %11, %0, %cst_12 {dimension_numbers = #tpu.dot_dimension_numbers<[1], [0], [0], [1], [0, 0, 1, 1], [], []>} : vector<288x32xf32>, vector<32x128xf32>, vector<288x128xf32> -> vector<288x128xf32>
    %13 = arith.maximumf %3, %6 : vector<288x128xf32>
    %14 = arith.maximumf %9, %12 : vector<288x128xf32>
    %15 = arith.maximumf %13, %14 : vector<288x128xf32>
    %c0_13 = arith.constant 0 : index
    %c0_14 = arith.constant 0 : index
    %16 = vector.load %arg3[%c0_13, %c0_14] : memref<1x128xf32, #tpu.memory_space<vmem>>, vector<1x128xf32>
    %17 = vector.broadcast %16 : vector<1x128xf32> to vector<288x128xf32>
    %18 = arith.addf %15, %17 : vector<288x128xf32>
    %cst_15 = arith.constant 0.000000e+00 : f32
    %19 = vector.broadcast %cst_15 : f32 to vector<288x128xf32>
    %20 = arith.maximumf %18, %19 : vector<288x128xf32>
    %c0_16 = arith.constant 0 : index
    %c0_17 = arith.constant 0 : index
    %21 = vector.load %arg4[%c0_16, %c0_17] : memref<288x128xf32, #tpu.memory_space<vmem>>, vector<288x128xf32>
    tpu.vector_store %arg4[%c0_16, %c0_17], %20 {strides = array<i32>} : memref<288x128xf32, #tpu.memory_space<vmem>>, vector<288x128xf32>,
    return
  }
  func.func @transform_0(%arg0: i32) -> (i32, i32, i32) {
    %c0_i32 = arith.constant 0 : i32
    %c0_i32_0 = arith.constant 0 : i32
    %c0_i32_1 = arith.constant 0 : i32
    return %c0_i32, %arg0, %c0_i32_0 : i32, i32, i32
  }
  func.func @transform_1(%arg0: i32) -> (i32, i32) {
    %c0_i32 = arith.constant 0 : i32
    %c0_i32_0 = arith.constant 0 : i32
    %c0_i32_1 = arith.constant 0 : i32
    return %c0_i32, %c0_i32_0 : i32, i32
  }
  func.func @transform_2(%arg0: i32) -> (i32, i32) {
    %c0_i32 = arith.constant 0 : i32
    %c0_i32_0 = arith.constant 0 : i32
    %c0_i32_1 = arith.constant 0 : i32
    return %c0_i32, %c0_i32_0 : i32, i32
  }
  func.func @transform_3(%arg0: i32) -> (i32, i32) {
    %c0_i32 = arith.constant 0 : i32
    %c0_i32_0 = arith.constant 0 : i32
    return %arg0, %c0_i32 : i32, i32
  }
}

module attributes {stable_mosaic.version = 11 : i64} {
  func.func @_conv_pool_relu_kernel(%arg0: i32, %arg1: memref<4x32x256xf32, #tpu.memory_space<vmem>>, %arg2: memref<256x128xf32, #tpu.memory_space<vmem>>, %arg3: memref<1x128xf32, #tpu.memory_space<vmem>>, %arg4: memref<32x128xf32, #tpu.memory_space<vmem>>) attributes {dimension_semantics = [#tpu.dimension_semantics<parallel>], iteration_bounds = array<i64: 1>, scalar_prefetch = 0 : i64, scratch_operands = 0 : i64, tpu.core_type = #tpu.core_type<tc>, window_params = [{transform_indices = @transform_0, window_bounds = array<i64: 4, 32, 256>}, {pipeline_mode = #tpu.pipeline_mode<synchronous>, transform_indices = @transform_1, window_bounds = array<i64: 256, 128>}, {pipeline_mode = #tpu.pipeline_mode<synchronous>, transform_indices = @transform_2, window_bounds = array<i64: 1, 128>}, {transform_indices = @transform_3, window_bounds = array<i64: 32, 128>}]} {
    %c0 = arith.constant 0 : index
    %c0_0 = arith.constant 0 : index
    %0 = vector.load %arg2[%c0, %c0_0] : memref<256x128xf32, #tpu.memory_space<vmem>>, vector<256x128xf32>
    %c0_1 = arith.constant 0 : index
    %c0_2 = arith.constant 0 : index
    %c0_3 = arith.constant 0 : index
    %1 = vector.load %arg1[%c0_1, %c0_2, %c0_3] : memref<4x32x256xf32, #tpu.memory_space<vmem>>, vector<1x32x256xf32>
    %2 = vector.shape_cast %1 : vector<1x32x256xf32> to vector<32x256xf32>
    %cst = arith.constant dense<0.000000e+00> : vector<32x128xf32>
    %3 = tpu.matmul %2, %0, %cst {dimension_numbers = #tpu.dot_dimension_numbers<[1], [0], [0], [1], [0, 0, 1, 1], [], []>} : vector<32x256xf32>, vector<256x128xf32>, vector<32x128xf32> -> vector<32x128xf32>
    %c1 = arith.constant 1 : index
    %c0_4 = arith.constant 0 : index
    %c0_5 = arith.constant 0 : index
    %4 = vector.load %arg1[%c1, %c0_4, %c0_5] : memref<4x32x256xf32, #tpu.memory_space<vmem>>, vector<1x32x256xf32>
    %5 = vector.shape_cast %4 : vector<1x32x256xf32> to vector<32x256xf32>
    %cst_6 = arith.constant dense<0.000000e+00> : vector<32x128xf32>
    %6 = tpu.matmul %5, %0, %cst_6 {dimension_numbers = #tpu.dot_dimension_numbers<[1], [0], [0], [1], [0, 0, 1, 1], [], []>} : vector<32x256xf32>, vector<256x128xf32>, vector<32x128xf32> -> vector<32x128xf32>
    %c2 = arith.constant 2 : index
    %c0_7 = arith.constant 0 : index
    %c0_8 = arith.constant 0 : index
    %7 = vector.load %arg1[%c2, %c0_7, %c0_8] : memref<4x32x256xf32, #tpu.memory_space<vmem>>, vector<1x32x256xf32>
    %8 = vector.shape_cast %7 : vector<1x32x256xf32> to vector<32x256xf32>
    %cst_9 = arith.constant dense<0.000000e+00> : vector<32x128xf32>
    %9 = tpu.matmul %8, %0, %cst_9 {dimension_numbers = #tpu.dot_dimension_numbers<[1], [0], [0], [1], [0, 0, 1, 1], [], []>} : vector<32x256xf32>, vector<256x128xf32>, vector<32x128xf32> -> vector<32x128xf32>
    %c3 = arith.constant 3 : index
    %c0_10 = arith.constant 0 : index
    %c0_11 = arith.constant 0 : index
    %10 = vector.load %arg1[%c3, %c0_10, %c0_11] : memref<4x32x256xf32, #tpu.memory_space<vmem>>, vector<1x32x256xf32>
    %11 = vector.shape_cast %10 : vector<1x32x256xf32> to vector<32x256xf32>
    %cst_12 = arith.constant dense<0.000000e+00> : vector<32x128xf32>
    %12 = tpu.matmul %11, %0, %cst_12 {dimension_numbers = #tpu.dot_dimension_numbers<[1], [0], [0], [1], [0, 0, 1, 1], [], []>} : vector<32x256xf32>, vector<256x128xf32>, vector<32x128xf32> -> vector<32x128xf32>
    %13 = arith.maximumf %3, %6 : vector<32x128xf32>
    %14 = arith.maximumf %9, %12 : vector<32x128xf32>
    %15 = arith.maximumf %13, %14 : vector<32x128xf32>
    %c0_13 = arith.constant 0 : index
    %c0_14 = arith.constant 0 : index
    %16 = vector.load %arg3[%c0_13, %c0_14] : memref<1x128xf32, #tpu.memory_space<vmem>>, vector<1x128xf32>
    %17 = vector.broadcast %16 : vector<1x128xf32> to vector<32x128xf32>
    %18 = arith.addf %15, %17 : vector<32x128xf32>
    %cst_15 = arith.constant 0.000000e+00 : f32
    %19 = vector.broadcast %cst_15 : f32 to vector<32x128xf32>
    %20 = arith.maximumf %18, %19 : vector<32x128xf32>
    %c0_16 = arith.constant 0 : index
    %c0_17 = arith.constant 0 : index
    %21 = vector.load %arg4[%c0_16, %c0_17] : memref<32x128xf32, #tpu.memory_space<vmem>>, vector<32x128xf32>
    tpu.vector_store %arg4[%c0_16, %c0_17], %20 {strides = array<i32>} : memref<32x128xf32, #tpu.memory_space<vmem>>, vector<32x128xf32>,
    return
  }
  func.func @transform_0(%arg0: i32) -> (i32, i32, i32) {
    %c0_i32 = arith.constant 0 : i32
    %c0_i32_0 = arith.constant 0 : i32
    %c0_i32_1 = arith.constant 0 : i32
    return %c0_i32, %arg0, %c0_i32_0 : i32, i32, i32
  }
  func.func @transform_1(%arg0: i32) -> (i32, i32) {
    %c0_i32 = arith.constant 0 : i32
    %c0_i32_0 = arith.constant 0 : i32
    %c0_i32_1 = arith.constant 0 : i32
    return %c0_i32, %c0_i32_0 : i32, i32
  }
  func.func @transform_2(%arg0: i32) -> (i32, i32) {
    %c0_i32 = arith.constant 0 : i32
    %c0_i32_0 = arith.constant 0 : i32
    %c0_i32_1 = arith.constant 0 : i32
    return %c0_i32, %c0_i32_0 : i32, i32
  }
  func.func @transform_3(%arg0: i32) -> (i32, i32) {
    %c0_i32 = arith.constant 0 : i32
    %c0_i32_0 = arith.constant 0 : i32
    return %arg0, %c0_i32 : i32, i32
  }
}

module attributes {stable_mosaic.version = 11 : i64} {
  func.func @_fc_relu_logsoftmax_kernel(%arg0: i32, %arg1: memref<8x320xf32, #tpu.memory_space<vmem>>, %arg2: memref<320x128xf32, #tpu.memory_space<vmem>>, %arg3: memref<1x128xf32, #tpu.memory_space<vmem>>, %arg4: memref<8x128xf32, #tpu.memory_space<vmem>>) attributes {dimension_semantics = [#tpu.dimension_semantics<parallel>], iteration_bounds = array<i64: 1>, scalar_prefetch = 0 : i64, scratch_operands = 0 : i64, tpu.core_type = #tpu.core_type<tc>, window_params = [{transform_indices = @transform_0, window_bounds = array<i64: 8, 320>}, {pipeline_mode = #tpu.pipeline_mode<synchronous>, transform_indices = @transform_1, window_bounds = array<i64: 320, 128>}, {pipeline_mode = #tpu.pipeline_mode<synchronous>, transform_indices = @transform_2, window_bounds = array<i64: 1, 128>}, {transform_indices = @transform_3, window_bounds = array<i64: 8, 128>}]} {
    %c0 = arith.constant 0 : index
    %c0_0 = arith.constant 0 : index
    %0 = vector.load %arg1[%c0, %c0_0] : memref<8x320xf32, #tpu.memory_space<vmem>>, vector<8x320xf32>
    %c0_1 = arith.constant 0 : index
    %c0_2 = arith.constant 0 : index
    %1 = vector.load %arg2[%c0_1, %c0_2] : memref<320x128xf32, #tpu.memory_space<vmem>>, vector<320x128xf32>
    %cst = arith.constant dense<0.000000e+00> : vector<8x128xf32>
    %2 = tpu.matmul %0, %1, %cst {dimension_numbers = #tpu.dot_dimension_numbers<[1], [0], [0], [1], [0, 0, 1, 1], [], []>} : vector<8x320xf32>, vector<320x128xf32>, vector<8x128xf32> -> vector<8x128xf32>
    %c0_3 = arith.constant 0 : index
    %c0_4 = arith.constant 0 : index
    %3 = vector.load %arg3[%c0_3, %c0_4] : memref<1x128xf32, #tpu.memory_space<vmem>>, vector<1x128xf32>
    %4 = vector.broadcast %3 : vector<1x128xf32> to vector<8x128xf32>
    %5 = arith.addf %2, %4 : vector<8x128xf32>
    %cst_5 = arith.constant 0.000000e+00 : f32
    %6 = vector.broadcast %cst_5 : f32 to vector<8x128xf32>
    %7 = arith.maximumf %5, %6 : vector<8x128xf32>
    %8 = tpu.iota {dimensions = array<i32: 1>} : vector<8x128xi32>
    %c50_i32 = arith.constant 50 : i32
    %9 = vector.broadcast %c50_i32 : i32 to vector<8x128xi32>
    %10 = arith.cmpi slt, %8, %9 : vector<8x128xi32>
    %cst_6 = arith.constant -1.000000e+30 : f32
    %11 = vector.broadcast %cst_6 : f32 to vector<8x128xf32>
    %12 = arith.select %10, %7, %11 : vector<8x128xi1>, vector<8x128xf32>
    %cst_7 = arith.constant dense<0xFF800000> : vector<8xf32>
    %13 = vector.multi_reduction <maximumf>, %12, %cst_7 [1] : vector<8x128xf32> to vector<8xf32>
    %14 = vector.shape_cast %13 : vector<8xf32> to vector<8x1xf32>
    %15 = vector.broadcast %14 : vector<8x1xf32> to vector<8x128xf32>
    %16 = arith.subf %12, %15 : vector<8x128xf32>
    %17 = math.exp %16 : vector<8x128xf32>
    %cst_8 = arith.constant dense<0.000000e+00> : vector<8xf32>
    %18 = vector.multi_reduction <add>, %17, %cst_8 [1] : vector<8x128xf32> to vector<8xf32>
    %19 = vector.shape_cast %18 : vector<8xf32> to vector<8x1xf32>
    %20 = math.log %19 : vector<8x1xf32>
    %21 = arith.addf %20, %14 : vector<8x1xf32>
    %22 = vector.broadcast %21 : vector<8x1xf32> to vector<8x128xf32>
    %23 = arith.subf %12, %22 : vector<8x128xf32>
    %c0_9 = arith.constant 0 : index
    %c0_10 = arith.constant 0 : index
    %24 = vector.load %arg4[%c0_9, %c0_10] : memref<8x128xf32, #tpu.memory_space<vmem>>, vector<8x128xf32>
    tpu.vector_store %arg4[%c0_9, %c0_10], %23 {strides = array<i32>} : memref<8x128xf32, #tpu.memory_space<vmem>>, vector<8x128xf32>,
    return
  }
  func.func @transform_0(%arg0: i32) -> (i32, i32) {
    %c0_i32 = arith.constant 0 : i32
    %c0_i32_0 = arith.constant 0 : i32
    return %arg0, %c0_i32 : i32, i32
  }
  func.func @transform_1(%arg0: i32) -> (i32, i32) {
    %c0_i32 = arith.constant 0 : i32
    %c0_i32_0 = arith.constant 0 : i32
    %c0_i32_1 = arith.constant 0 : i32
    return %c0_i32, %c0_i32_0 : i32, i32
  }
  func.func @transform_2(%arg0: i32) -> (i32, i32) {
    %c0_i32 = arith.constant 0 : i32
    %c0_i32_0 = arith.constant 0 : i32
    %c0_i32_1 = arith.constant 0 : i32
    return %c0_i32, %c0_i32_0 : i32, i32
  }
  func.func @transform_3(%arg0: i32) -> (i32, i32) {
    %c0_i32 = arith.constant 0 : i32
    %c0_i32_0 = arith.constant 0 : i32
    return %arg0, %c0_i32 : i32, i32
  }
}

</mosaic_0001>

<llo_original>
// kernel: submodel_forward.3
$region0: #{submodel_forward.3}
  #allocation0 [shape = 'u32[]', space=smem, size = 0x4, offset = 0x4, fixed_abs, tag = 'smem constant byte address 0x4 - core index']
  #allocation1 [shape = 'u32[72,128]{1,0:T(1,128)}', space=vmem, size = 0x9000, scoped, tag = 'internal scratch']
  %s0 = inlined_call_operand.vmem [shape: f32[4,288,32], index: 0, kind: input, shape index: {}]
  %s1 = inlined_call_operand.vmem [shape: f32[32,128], index: 1, kind: input, shape index: {}]
  %s2 = inlined_call_operand.vmem [shape: f32[1,128], index: 2, kind: input, shape index: {}]
  %s3 = inlined_call_operand.vmem [shape: f32[288,128], index: 3, kind: output, shape index: {}]
  %s4 = sld [smem:[#allocation0]]
  $region22: #{submodel_forward.3} parent=0
    _
  %s6 = ssub.s32 1, %s4
  %s7 = scalar_select 0, %s6, %s4
  // Predicated region
  $region2: #{submodel_forward.3} parent=0 // pred_check
    _
  $region3: #{submodel_forward.3} parent=0 // pred_check_branch
    %9 = sbr.rel (0) target = $region5
  $region4: #{submodel_forward.3} parent=0 // pred_region
    _
  $region5: #{submodel_forward.3} parent=0 // pred_fallthru
    _
  // Predicated region
  $region6: #{submodel_forward.3} parent=0 // pred_check
    _
  $region7: #{submodel_forward.3} parent=0 // pred_check_branch
    %11 = sbr.rel (0) target = $region9
  $region8: #{submodel_forward.3} parent=0 // pred_region
    _
  $region9: #{submodel_forward.3} parent=0 // pred_fallthru
    _
  // Predicated region
  $region10: #{submodel_forward.3} parent=0 // pred_check
    _
  $region11: #{submodel_forward.3} parent=0 // pred_check_branch
    %13 = sbr.rel (0) target = $region13
  $region12: #{submodel_forward.3} parent=0 // pred_region
    _
  $region13: #{submodel_forward.3} parent=0 // pred_fallthru
    _
  %v14 = vld [vmem:[%s1] sm:$0xff]
  %v15 = vld [vmem:[%s1 + $0x8] sm:$0xff]
  %v16 = vld [vmem:[%s1 + $0x10] sm:$0xff]
  %v17 = vld [vmem:[%s1 + $0x18] sm:$0xff]
  %v18 = vld [vmem:[%s0] sm:$0xff]
  %v19 = vld [vmem:[%s0 + $0x8] sm:$0xff]
  %v20 = vld [vmem:[%s0 + $0x10] sm:$0xff]
  %v21 = vld [vmem:[%s0 + $0x18] sm:$0xff]
  %v22 = vld [vmem:[%s0 + $0x20] sm:$0xff]
  %v23 = vld [vmem:[%s0 + $0x28] sm:$0xff]
  %v24 = vld [vmem:[%s0 + $0x30] sm:$0xff]
  %v25 = vld [vmem:[%s0 + $0x38] sm:$0xff]
  %v26 = vld [vmem:[%s0 + $0x40] sm:$0xff]
  %v27 = vld [vmem:[%s0 + $0x48] sm:$0xff]
  %v28 = vld [vmem:[%s0 + $0x50] sm:$0xff]
  %v29 = vld [vmem:[%s0 + $0x58] sm:$0xff]
  %v30 = vld [vmem:[%s0 + $0x60] sm:$0xff]
  %v31 = vld [vmem:[%s0 + $0x68] sm:$0xff]
  %v32 = vld [vmem:[%s0 + $0x70] sm:$0xff]
  %v33 = vld [vmem:[%s0 + $0x78] sm:$0xff]
  %v34 = vld [vmem:[%s0 + $0x80] sm:$0xff]
  %v35 = vld [vmem:[%s0 + $0x88] sm:$0xff]
  %v36 = vld [vmem:[%s0 + $0x90] sm:$0xff]
  %v37 = vld [vmem:[%s0 + $0x98] sm:$0xff]
  %v38 = vld [vmem:[%s0 + $0xa0] sm:$0xff]
  %v39 = vld [vmem:[%s0 + $0xa8] sm:$0xff]
  %v40 = vld [vmem:[%s0 + $0xb0] sm:$0xff]
  %v41 = vld [vmem:[%s0 + $0xb8] sm:$0xff]
  %v42 = vld [vmem:[%s0 + $0xc0] sm:$0xff]
  %v43 = vld [vmem:[%s0 + $0xc8] sm:$0xff]
  %v44 = vld [vmem:[%s0 + $0xd0] sm:$0xff]
  %v45 = vld [vmem:[%s0 + $0xd8] sm:$0xff]
  %v46 = vld [vmem:[%s0 + $0xe0] sm:$0xff]
  %v47 = vld [vmem:[%s0 + $0xe8] sm:$0xff]
  %v48 = vld [vmem:[%s0 + $0xf0] sm:$0xff]
  %v49 = vld [vmem:[%s0 + $0xf8] sm:$0xff]
  %v50 = vld [vmem:[%s0 + $0x100] sm:$0xff]
  %v51 = vld [vmem:[%s0 + $0x108] sm:$0xff]
  %v52 = vld [vmem:[%s0 + $0x110] sm:$0xff]
  %v53 = vld [vmem:[%s0 + $0x118] sm:$0xff]
  %vm54 = vcmask 261120
  %v56 = vsel %vm54, %v18, 0
  %v59 = vsel %vm54, %v19, 0
  %v62 = vsel %vm54, %v20, 0
  %v65 = vsel %vm54, %v21, 0
  %v68 = vsel %vm54, %v22, 0
  %v71 = vsel %vm54, %v23, 0
  %v74 = vsel %vm54, %v24, 0
  %v77 = vsel %vm54, %v25, 0
  %v80 = vsel %vm54, %v26, 0
  %v83 = vsel %vm54, %v27, 0
  %v86 = vsel %vm54, %v28, 0
  %v89 = vsel %vm54, %v29, 0
  %v92 = vsel %vm54, %v30, 0
  %v95 = vsel %vm54, %v31, 0
  %v98 = vsel %vm54, %v32, 0
  %v101 = vsel %vm54, %v33, 0
  %v104 = vsel %vm54, %v34, 0
  %v107 = vsel %vm54, %v35, 0
  %v110 = vsel %vm54, %v36, 0
  %v113 = vsel %vm54, %v37, 0
  %v116 = vsel %vm54, %v38, 0
  %v119 = vsel %vm54, %v39, 0
  %v122 = vsel %vm54, %v40, 0
  %v125 = vsel %vm54, %v41, 0
  %v128 = vsel %vm54, %v42, 0
  %v131 = vsel %vm54, %v43, 0
  %v134 = vsel %vm54, %v44, 0
  %v137 = vsel %vm54, %v45, 0
  %v140 = vsel %vm54, %v46, 0
  %v143 = vsel %vm54, %v47, 0
  %v146 = vsel %vm54, %v48, 0
  %v149 = vsel %vm54, %v49, 0
  %v152 = vsel %vm54, %v50, 0
  %v155 = vsel %vm54, %v51, 0
  %v158 = vsel %vm54, %v52, 0
  %v161 = vsel %vm54, %v53, 0
  %163 = vmatpush.msra.mxu0 0.0
  %164 = vmatpush.msra.mxu0 0.0
  %165 = vmatpush.msra.mxu0 0.0
  %166 = vmatpush.msra.mxu0 0.0
  %167 = vmatpush.msra.mxu0 0.0
  %168 = vmatpush.msra.mxu0 0.0
  %169 = vmatpush.msra.mxu0 0.0
  %170 = vmatpush.msra.mxu0 0.0
  %171 = vmatpush.msra.mxu0 0.0
  %172 = vmatpush.msra.mxu0 0.0
  %173 = vmatpush.msra.mxu0 0.0
  %174 = vmatpush.msra.mxu0 0.0
  %175 = vmatpush.msra.mxu0 %v17
  %176 = vmatpush.msra.mxu0 %v16
  %177 = vmatpush.msra.mxu0 %v15
  %178 = vmatpush.msra.mxu0 %v14
  %179 = vmatmul.f32.gmra.mxu0 %v56
  %v180 = vpop.f32.mrf.mxu0
  %v181 = vadd.f32 0.0, %v180
  %182 = vmatmul.f32.gmra.mxu0 %v59
  %v183 = vpop.f32.mrf.mxu0
  %v184 = vadd.f32 0.0, %v183
  %185 = vmatmul.f32.gmra.mxu0 %v62
  %v186 = vpop.f32.mrf.mxu0
  %v187 = vadd.f32 0.0, %v186
  %188 = vmatmul.f32.gmra.mxu0 %v65
  %v189 = vpop.f32.mrf.mxu0
  %v190 = vadd.f32 0.0, %v189
  %191 = vmatmul.f32.gmra.mxu0 %v68
  %v192 = vpop.f32.mrf.mxu0
  %v193 = vadd.f32 0.0, %v192
  %194 = vmatmul.f32.gmra.mxu0 %v71
  %v195 = vpop.f32.mrf.mxu0
  %v196 = vadd.f32 0.0, %v195
  %197 = vmatmul.f32.gmra.mxu0 %v74
  %v198 = vpop.f32.mrf.mxu0
  %v199 = vadd.f32 0.0, %v198
  %200 = vmatmul.f32.gmra.mxu0 %v77
  %v201 = vpop.f32.mrf.mxu0
  %v202 = vadd.f32 0.0, %v201
  %203 = vmatmul.f32.gmra.mxu0 %v80
  %v204 = vpop.f32.mrf.mxu0
  %v205 = vadd.f32 0.0, %v204
  %206 = vmatmul.f32.gmra.mxu0 %v83
  %v207 = vpop.f32.mrf.mxu0
  %v208 = vadd.f32 0.0, %v207
  %209 = vmatmul.f32.gmra.mxu0 %v86
  %v210 = vpop.f32.mrf.mxu0
  %v211 = vadd.f32 0.0, %v210
  %212 = vmatmul.f32.gmra.mxu0 %v89
  %v213 = vpop.f32.mrf.mxu0
  %v214 = vadd.f32 0.0, %v213
  %215 = vmatmul.f32.gmra.mxu0 %v92
  %v216 = vpop.f32.mrf.mxu0
  %v217 = vadd.f32 0.0, %v216
  %218 = vmatmul.f32.gmra.mxu0 %v95
  %v219 = vpop.f32.mrf.mxu0
  %v220 = vadd.f32 0.0, %v219
  %221 = vmatmul.f32.gmra.mxu0 %v98
  %v222 = vpop.f32.mrf.mxu0
  %v223 = vadd.f32 0.0, %v222
  %224 = vmatmul.f32.gmra.mxu0 %v101
  %v225 = vpop.f32.mrf.mxu0
  %v226 = vadd.f32 0.0, %v225
  %227 = vmatmul.f32.gmra.mxu0 %v104
  %v228 = vpop.f32.mrf.mxu0
  %v229 = vadd.f32 0.0, %v228
  %230 = vmatmul.f32.gmra.mxu0 %v107
  %v231 = vpop.f32.mrf.mxu0
  %v232 = vadd.f32 0.0, %v231
  %233 = vmatmul.f32.gmra.mxu0 %v110
  %v234 = vpop.f32.mrf.mxu0
  %v235 = vadd.f32 0.0, %v234
  %236 = vmatmul.f32.gmra.mxu0 %v113
  %v237 = vpop.f32.mrf.mxu0
  %v238 = vadd.f32 0.0, %v237
  %239 = vmatmul.f32.gmra.mxu0 %v116
  %v240 = vpop.f32.mrf.mxu0
  %v241 = vadd.f32 0.0, %v240
  %242 = vmatmul.f32.gmra.mxu0 %v119
  %v243 = vpop.f32.mrf.mxu0
  %v244 = vadd.f32 0.0, %v243
  %245 = vmatmul.f32.gmra.mxu0 %v122
  %v246 = vpop.f32.mrf.mxu0
  %v247 = vadd.f32 0.0, %v246
  %248 = vmatmul.f32.gmra.mxu0 %v125
  %v249 = vpop.f32.mrf.mxu0
  %v250 = vadd.f32 0.0, %v249
  %251 = vmatmul.f32.gmra.mxu0 %v128
  %v252 = vpop.f32.mrf.mxu0
  %v253 = vadd.f32 0.0, %v252
  %254 = vmatmul.f32.gmra.mxu0 %v131
  %v255 = vpop.f32.mrf.mxu0
  %v256 = vadd.f32 0.0, %v255
  %257 = vmatmul.f32.gmra.mxu0 %v134
  %v258 = vpop.f32.mrf.mxu0
  %v259 = vadd.f32 0.0, %v258
  %260 = vmatmul.f32.gmra.mxu0 %v137
  %v261 = vpop.f32.mrf.mxu0
  %v262 = vadd.f32 0.0, %v261
  %263 = vmatmul.f32.gmra.mxu0 %v140
  %v264 = vpop.f32.mrf.mxu0
  %v265 = vadd.f32 0.0, %v264
  %266 = vmatmul.f32.gmra.mxu0 %v143
  %v267 = vpop.f32.mrf.mxu0
  %v268 = vadd.f32 0.0, %v267
  %269 = vmatmul.f32.gmra.mxu0 %v146
  %v270 = vpop.f32.mrf.mxu0
  %v271 = vadd.f32 0.0, %v270
  %272 = vmatmul.f32.gmra.mxu0 %v149
  %v273 = vpop.f32.mrf.mxu0
  %v274 = vadd.f32 0.0, %v273
  %275 = vmatmul.f32.gmra.mxu0 %v152
  %v276 = vpop.f32.mrf.mxu0
  %v277 = vadd.f32 0.0, %v276
  %278 = vmatmul.f32.gmra.mxu0 %v155
  %v279 = vpop.f32.mrf.mxu0
  %v280 = vadd.f32 0.0, %v279
  %281 = vmatmul.f32.gmra.mxu0 %v158
  %v282 = vpop.f32.mrf.mxu0
  %v283 = vadd.f32 0.0, %v282
  %284 = vmatmul.f32.gmra.mxu0 %v161
  %v285 = vpop.f32.mrf.mxu0
  %v286 = vadd.f32 0.0, %v285
  %287 = vdwg.mxu0
  %s288 = scalar_lea.vmem %s0, 288
  %v289 = vld [vmem:[%s288] sm:$0xff]
  %v290 = vld [vmem:[%s288 + $0x8] sm:$0xff]
  %v291 = vld [vmem:[%s288 + $0x10] sm:$0xff]
  %v292 = vld [vmem:[%s288 + $0x18] sm:$0xff]
  %v293 = vld [vmem:[%s288 + $0x20] sm:$0xff]
  %v294 = vld [vmem:[%s288 + $0x28] sm:$0xff]
  %v295 = vld [vmem:[%s288 + $0x30] sm:$0xff]
  %v296 = vld [vmem:[%s288 + $0x38] sm:$0xff]
  %v297 = vld [vmem:[%s288 + $0x40] sm:$0xff]
  %v298 = vld [vmem:[%s288 + $0x48] sm:$0xff]
  %v299 = vld [vmem:[%s288 + $0x50] sm:$0xff]
  %v300 = vld [vmem:[%s288 + $0x58] sm:$0xff]
  %v301 = vld [vmem:[%s288 + $0x60] sm:$0xff]
  %v302 = vld [vmem:[%s288 + $0x68] sm:$0xff]
  %v303 = vld [vmem:[%s288 + $0x70] sm:$0xff]
  %v304 = vld [vmem:[%s288 + $0x78] sm:$0xff]
  %v305 = vld [vmem:[%s288 + $0x80] sm:$0xff]
  %v306 = vld [vmem:[%s288 + $0x88] sm:$0xff]
  %v307 = vld [vmem:[%s288 + $0x90] sm:$0xff]
  %v308 = vld [vmem:[%s288 + $0x98] sm:$0xff]
  %v309 = vld [vmem:[%s288 + $0xa0] sm:$0xff]
  %v310 = vld [vmem:[%s288 + $0xa8] sm:$0xff]
  %v311 = vld [vmem:[%s288 + $0xb0] sm:$0xff]
  %v312 = vld [vmem:[%s288 + $0xb8] sm:$0xff]
  %v313 = vld [vmem:[%s288 + $0xc0] sm:$0xff]
  %v314 = vld [vmem:[%s288 + $0xc8] sm:$0xff]
  %v315 = vld [vmem:[%s288 + $0xd0] sm:$0xff]
  %v316 = vld [vmem:[%s288 + $0xd8] sm:$0xff]
  %v317 = vld [vmem:[%s288 + $0xe0] sm:$0xff]
  %v318 = vld [vmem:[%s288 + $0xe8] sm:$0xff]
  %v319 = vld [vmem:[%s288 + $0xf0] sm:$0xff]
  %v320 = vld [vmem:[%s288 + $0xf8] sm:$0xff]
  %v321 = vld [vmem:[%s288 + $0x100] sm:$0xff]
  %v322 = vld [vmem:[%s288 + $0x108] sm:$0xff]
  %v323 = vld [vmem:[%s288 + $0x110] sm:$0xff]
  %v324 = vld [vmem:[%s288 + $0x118] sm:$0xff]
  %v326 = vsel %vm54, %v289, 0
  %v329 = vsel %vm54, %v290, 0
  %v332 = vsel %vm54, %v291, 0
  %v335 = vsel %vm54, %v292, 0
  %v338 = vsel %vm54, %v293, 0
  %v341 = vsel %vm54, %v294, 0
  %v344 = vsel %vm54, %v295, 0
  %v347 = vsel %vm54, %v296, 0
  %v350 = vsel %vm54, %v297, 0
  %v353 = vsel %vm54, %v298, 0
  %v356 = vsel %vm54, %v299, 0
  %v359 = vsel %vm54, %v300, 0
  %v362 = vsel %vm54, %v301, 0
  %v365 = vsel %vm54, %v302, 0
  %v368 = vsel %vm54, %v303, 0
  %v371 = vsel %vm54, %v304, 0
  %v374 = vsel %vm54, %v305, 0
  %v377 = vsel %vm54, %v306, 0
  %v380 = vsel %vm54, %v307, 0
  %v383 = vsel %vm54, %v308, 0
  %v386 = vsel %vm54, %v309, 0
  %v389 = vsel %vm54, %v310, 0
  %v392 = vsel %vm54, %v311, 0
  %v395 = vsel %vm54, %v312, 0
  %v398 = vsel %vm54, %v313, 0
  %v401 = vsel %vm54, %v314, 0
  %v404 = vsel %vm54, %v315, 0
  %v407 = vsel %vm54, %v316, 0
  %v410 = vsel %vm54, %v317, 0
  %v413 = vsel %vm54, %v318, 0
  %v416 = vsel %vm54, %v319, 0
  %v419 = vsel %vm54, %v320, 0
  %v422 = vsel %vm54, %v321, 0
  %v425 = vsel %vm54, %v322, 0
  %v428 = vsel %vm54, %v323, 0
  %v431 = vsel %vm54, %v324, 0
  %433 = vmatpush.msra.mxu0 0.0
  %434 = vmatpush.msra.mxu0 0.0
  %435 = vmatpush.msra.mxu0 0.0
  %436 = vmatpush.msra.mxu0 0.0
  %437 = vmatpush.msra.mxu0 0.0
  %438 = vmatpush.msra.mxu0 0.0
  %439 = vmatpush.msra.mxu0 0.0
  %440 = vmatpush.msra.mxu0 0.0
  %441 = vmatpush.msra.mxu0 0.0
  %442 = vmatpush.msra.mxu0 0.0
  %443 = vmatpush.msra.mxu0 0.0
  %444 = vmatpush.msra.mxu0 0.0
  %445 = vmatpush.msra.mxu0 %v17
  %446 = vmatpush.msra.mxu0 %v16
  %447 = vmatpush.msra.mxu0 %v15
  %448 = vmatpush.msra.mxu0 %v14
  %449 = vmatmul.f32.gmra.mxu0 %v326
  %v450 = vpop.f32.mrf.mxu0
  %v451 = vadd.f32 0.0, %v450
  %452 = vmatmul.f32.gmra.mxu0 %v329
  %v453 = vpop.f32.mrf.mxu0
  %v454 = vadd.f32 0.0, %v453
  %455 = vmatmul.f32.gmra.mxu0 %v332
  %v456 = vpop.f32.mrf.mxu0
  %v457 = vadd.f32 0.0, %v456
  %458 = vmatmul.f32.gmra.mxu0 %v335
  %v459 = vpop.f32.mrf.mxu0
  %v460 = vadd.f32 0.0, %v459
  %461 = vmatmul.f32.gmra.mxu0 %v338
  %v462 = vpop.f32.mrf.mxu0
  %v463 = vadd.f32 0.0, %v462
  %464 = vmatmul.f32.gmra.mxu0 %v341
  %v465 = vpop.f32.mrf.mxu0
  %v466 = vadd.f32 0.0, %v465
  %467 = vmatmul.f32.gmra.mxu0 %v344
  %v468 = vpop.f32.mrf.mxu0
  %v469 = vadd.f32 0.0, %v468
  %470 = vmatmul.f32.gmra.mxu0 %v347
  %v471 = vpop.f32.mrf.mxu0
  %v472 = vadd.f32 0.0, %v471
  %473 = vmatmul.f32.gmra.mxu0 %v350
  %v474 = vpop.f32.mrf.mxu0
  %v475 = vadd.f32 0.0, %v474
  %476 = vmatmul.f32.gmra.mxu0 %v353
  %v477 = vpop.f32.mrf.mxu0
  %v478 = vadd.f32 0.0, %v477
  %479 = vmatmul.f32.gmra.mxu0 %v356
  %v480 = vpop.f32.mrf.mxu0
  %v481 = vadd.f32 0.0, %v480
  %482 = vmatmul.f32.gmra.mxu0 %v359
  %v483 = vpop.f32.mrf.mxu0
  %v484 = vadd.f32 0.0, %v483
  %485 = vmatmul.f32.gmra.mxu0 %v362
  %v486 = vpop.f32.mrf.mxu0
  %v487 = vadd.f32 0.0, %v486
  %488 = vmatmul.f32.gmra.mxu0 %v365
  %v489 = vpop.f32.mrf.mxu0
  %v490 = vadd.f32 0.0, %v489
  %491 = vmatmul.f32.gmra.mxu0 %v368
  %v492 = vpop.f32.mrf.mxu0
  %v493 = vadd.f32 0.0, %v492
  %494 = vmatmul.f32.gmra.mxu0 %v371
  %v495 = vpop.f32.mrf.mxu0
  %v496 = vadd.f32 0.0, %v495
  %497 = vmatmul.f32.gmra.mxu0 %v374
  %v498 = vpop.f32.mrf.mxu0
  %v499 = vadd.f32 0.0, %v498
  %500 = vmatmul.f32.gmra.mxu0 %v377
  %v501 = vpop.f32.mrf.mxu0
  %v502 = vadd.f32 0.0, %v501
  %503 = vmatmul.f32.gmra.mxu0 %v380
  %v504 = vpop.f32.mrf.mxu0
  %v505 = vadd.f32 0.0, %v504
  %506 = vmatmul.f32.gmra.mxu0 %v383
  %v507 = vpop.f32.mrf.mxu0
  %v508 = vadd.f32 0.0, %v507
  %509 = vmatmul.f32.gmra.mxu0 %v386
  %v510 = vpop.f32.mrf.mxu0
  %v511 = vadd.f32 0.0, %v510
  %512 = vmatmul.f32.gmra.mxu0 %v389
  %v513 = vpop.f32.mrf.mxu0
  %v514 = vadd.f32 0.0, %v513
  %515 = vmatmul.f32.gmra.mxu0 %v392
  %v516 = vpop.f32.mrf.mxu0
  %v517 = vadd.f32 0.0, %v516
  %518 = vmatmul.f32.gmra.mxu0 %v395
  %v519 = vpop.f32.mrf.mxu0
  %v520 = vadd.f32 0.0, %v519
  %521 = vmatmul.f32.gmra.mxu0 %v398
  %v522 = vpop.f32.mrf.mxu0
  %v523 = vadd.f32 0.0, %v522
  %524 = vmatmul.f32.gmra.mxu0 %v401
  %v525 = vpop.f32.mrf.mxu0
  %v526 = vadd.f32 0.0, %v525
  %527 = vmatmul.f32.gmra.mxu0 %v404
  %v528 = vpop.f32.mrf.mxu0
  %v529 = vadd.f32 0.0, %v528
  %530 = vmatmul.f32.gmra.mxu0 %v407
  %v531 = vpop.f32.mrf.mxu0
  %v532 = vadd.f32 0.0, %v531
  %533 = vmatmul.f32.gmra.mxu0 %v410
  %v534 = vpop.f32.mrf.mxu0
  %v535 = vadd.f32 0.0, %v534
  %536 = vmatmul.f32.gmra.mxu0 %v413
  %v537 = vpop.f32.mrf.mxu0
  %v538 = vadd.f32 0.0, %v537
  %539 = vmatmul.f32.gmra.mxu0 %v416
  %v540 = vpop.f32.mrf.mxu0
  %v541 = vadd.f32 0.0, %v540
  %542 = vmatmul.f32.gmra.mxu0 %v419
  %v543 = vpop.f32.mrf.mxu0
  %v544 = vadd.f32 0.0, %v543
  %545 = vmatmul.f32.gmra.mxu0 %v422
  %v546 = vpop.f32.mrf.mxu0
  %v547 = vadd.f32 0.0, %v546
  %548 = vmatmul.f32.gmra.mxu0 %v425
  %v549 = vpop.f32.mrf.mxu0
  %v550 = vadd.f32 0.0, %v549
  %551 = vmatmul.f32.gmra.mxu0 %v428
  %v552 = vpop.f32.mrf.mxu0
  %v553 = vadd.f32 0.0, %v552
  %554 = vmatmul.f32.gmra.mxu0 %v431
  %v555 = vpop.f32.mrf.mxu0
  %v556 = vadd.f32 0.0, %v555
  %557 = vdwg.mxu0
  %s558 = scalar_lea.vmem %s0, 576
  %v559 = vld [vmem:[%s558] sm:$0xff]
  %v560 = vld [vmem:[%s558 + $0x8] sm:$0xff]
  %v561 = vld [vmem:[%s558 + $0x10] sm:$0xff]
  %v562 = vld [vmem:[%s558 + $0x18] sm:$0xff]
  %v563 = vld [vmem:[%s558 + $0x20] sm:$0xff]
  %v564 = vld [vmem:[%s558 + $0x28] sm:$0xff]
  %v565 = vld [vmem:[%s558 + $0x30] sm:$0xff]
  %v566 = vld [vmem:[%s558 + $0x38] sm:$0xff]
  %v567 = vld [vmem:[%s558 + $0x40] sm:$0xff]
  %v568 = vld [vmem:[%s558 + $0x48] sm:$0xff]
  %v569 = vld [vmem:[%s558 + $0x50] sm:$0xff]
  %v570 = vld [vmem:[%s558 + $0x58] sm:$0xff]
  %v571 = vld [vmem:[%s558 + $0x60] sm:$0xff]
  %v572 = vld [vmem:[%s558 + $0x68] sm:$0xff]
  %v573 = vld [vmem:[%s558 + $0x70] sm:$0xff]
  %v574 = vld [vmem:[%s558 + $0x78] sm:$0xff]
  %v575 = vld [vmem:[%s558 + $0x80] sm:$0xff]
  %v576 = vld [vmem:[%s558 + $0x88] sm:$0xff]
  %v577 = vld [vmem:[%s558 + $0x90] sm:$0xff]
  %v578 = vld [vmem:[%s558 + $0x98] sm:$0xff]
  %v579 = vld [vmem:[%s558 + $0xa0] sm:$0xff]
  %v580 = vld [vmem:[%s558 + $0xa8] sm:$0xff]
  %v581 = vld [vmem:[%s558 + $0xb0] sm:$0xff]
  %v582 = vld [vmem:[%s558 + $0xb8] sm:$0xff]
  %v583 = vld [vmem:[%s558 + $0xc0] sm:$0xff]
  %v584 = vld [vmem:[%s558 + $0xc8] sm:$0xff]
  %v585 = vld [vmem:[%s558 + $0xd0] sm:$0xff]
  %v586 = vld [vmem:[%s558 + $0xd8] sm:$0xff]
  %v587 = vld [vmem:[%s558 + $0xe0] sm:$0xff]
  %v588 = vld [vmem:[%s558 + $0xe8] sm:$0xff]
  %v589 = vld [vmem:[%s558 + $0xf0] sm:$0xff]
  %v590 = vld [vmem:[%s558 + $0xf8] sm:$0xff]
  %v591 = vld [vmem:[%s558 + $0x100] sm:$0xff]
  %v592 = vld [vmem:[%s558 + $0x108] sm:$0xff]
  %v593 = vld [vmem:[%s558 + $0x110] sm:$0xff]
  %v594 = vld [vmem:[%s558 + $0x118] sm:$0xff]
  %v596 = vsel %vm54, %v559, 0
  %v599 = vsel %vm54, %v560, 0
  %v602 = vsel %vm54, %v561, 0
  %v605 = vsel %vm54, %v562, 0
  %v608 = vsel %vm54, %v563, 0
  %v611 = vsel %vm54, %v564, 0
  %v614 = vsel %vm54, %v565, 0
  %v617 = vsel %vm54, %v566, 0
  %v620 = vsel %vm54, %v567, 0
  %v623 = vsel %vm54, %v568, 0
  %v626 = vsel %vm54, %v569, 0
  %v629 = vsel %vm54, %v570, 0
  %v632 = vsel %vm54, %v571, 0
  %v635 = vsel %vm54, %v572, 0
  %v638 = vsel %vm54, %v573, 0
  %v641 = vsel %vm54, %v574, 0
  %v644 = vsel %vm54, %v575, 0
  %v647 = vsel %vm54, %v576, 0
  %v650 = vsel %vm54, %v577, 0
  %v653 = vsel %vm54, %v578, 0
  %v656 = vsel %vm54, %v579, 0
  %v659 = vsel %vm54, %v580, 0
  %v662 = vsel %vm54, %v581, 0
  %v665 = vsel %vm54, %v582, 0
  %v668 = vsel %vm54, %v583, 0
  %v671 = vsel %vm54, %v584, 0
  %v674 = vsel %vm54, %v585, 0
  %v677 = vsel %vm54, %v586, 0
  %v680 = vsel %vm54, %v587, 0
  %v683 = vsel %vm54, %v588, 0
  %v686 = vsel %vm54, %v589, 0
  %v689 = vsel %vm54, %v590, 0
  %v692 = vsel %vm54, %v591, 0
  %v695 = vsel %vm54, %v592, 0
  %v698 = vsel %vm54, %v593, 0
  %v701 = vsel %vm54, %v594, 0
  %703 = vmatpush.msra.mxu0 0.0
  %704 = vmatpush.msra.mxu0 0.0
  %705 = vmatpush.msra.mxu0 0.0
  %706 = vmatpush.msra.mxu0 0.0
  %707 = vmatpush.msra.mxu0 0.0
  %708 = vmatpush.msra.mxu0 0.0
  %709 = vmatpush.msra.mxu0 0.0
  %710 = vmatpush.msra.mxu0 0.0
  %711 = vmatpush.msra.mxu0 0.0
  %712 = vmatpush.msra.mxu0 0.0
  %713 = vmatpush.msra.mxu0 0.0
  %714 = vmatpush.msra.mxu0 0.0
  %715 = vmatpush.msra.mxu0 %v17
  %716 = vmatpush.msra.mxu0 %v16
  %717 = vmatpush.msra.mxu0 %v15
  %718 = vmatpush.msra.mxu0 %v14
  %719 = vmatmul.f32.gmra.mxu0 %v596
  %v720 = vpop.f32.mrf.mxu0
  %v721 = vadd.f32 0.0, %v720
  %722 = vmatmul.f32.gmra.mxu0 %v599
  %v723 = vpop.f32.mrf.mxu0
  %v724 = vadd.f32 0.0, %v723
  %725 = vmatmul.f32.gmra.mxu0 %v602
  %v726 = vpop.f32.mrf.mxu0
  %v727 = vadd.f32 0.0, %v726
  %728 = vmatmul.f32.gmra.mxu0 %v605
  %v729 = vpop.f32.mrf.mxu0
  %v730 = vadd.f32 0.0, %v729
  %731 = vmatmul.f32.gmra.mxu0 %v608
  %v732 = vpop.f32.mrf.mxu0
  %v733 = vadd.f32 0.0, %v732
  %734 = vmatmul.f32.gmra.mxu0 %v611
  %v735 = vpop.f32.mrf.mxu0
  %v736 = vadd.f32 0.0, %v735
  %737 = vmatmul.f32.gmra.mxu0 %v614
  %v738 = vpop.f32.mrf.mxu0
  %v739 = vadd.f32 0.0, %v738
  %740 = vmatmul.f32.gmra.mxu0 %v617
  %v741 = vpop.f32.mrf.mxu0
  %v742 = vadd.f32 0.0, %v741
  %743 = vmatmul.f32.gmra.mxu0 %v620
  %v744 = vpop.f32.mrf.mxu0
  %v745 = vadd.f32 0.0, %v744
  %746 = vmatmul.f32.gmra.mxu0 %v623
  %v747 = vpop.f32.mrf.mxu0
  %v748 = vadd.f32 0.0, %v747
  %749 = vmatmul.f32.gmra.mxu0 %v626
  %v750 = vpop.f32.mrf.mxu0
  %v751 = vadd.f32 0.0, %v750
  %752 = vmatmul.f32.gmra.mxu0 %v629
  %v753 = vpop.f32.mrf.mxu0
  %v754 = vadd.f32 0.0, %v753
  %755 = vmatmul.f32.gmra.mxu0 %v632
  %v756 = vpop.f32.mrf.mxu0
  %v757 = vadd.f32 0.0, %v756
  %758 = vmatmul.f32.gmra.mxu0 %v635
  %v759 = vpop.f32.mrf.mxu0
  %v760 = vadd.f32 0.0, %v759
  %761 = vmatmul.f32.gmra.mxu0 %v638
  %v762 = vpop.f32.mrf.mxu0
  %v763 = vadd.f32 0.0, %v762
  %764 = vmatmul.f32.gmra.mxu0 %v641
  %v765 = vpop.f32.mrf.mxu0
  %v766 = vadd.f32 0.0, %v765
  %767 = vmatmul.f32.gmra.mxu0 %v644
  %v768 = vpop.f32.mrf.mxu0
  %v769 = vadd.f32 0.0, %v768
  %770 = vmatmul.f32.gmra.mxu0 %v647
  %v771 = vpop.f32.mrf.mxu0
  %v772 = vadd.f32 0.0, %v771
  %773 = vmatmul.f32.gmra.mxu0 %v650
  %v774 = vpop.f32.mrf.mxu0
  %v775 = vadd.f32 0.0, %v774
  %776 = vmatmul.f32.gmra.mxu0 %v653
  %v777 = vpop.f32.mrf.mxu0
  %v778 = vadd.f32 0.0, %v777
  %779 = vmatmul.f32.gmra.mxu0 %v656
  %v780 = vpop.f32.mrf.mxu0
  %v781 = vadd.f32 0.0, %v780
  %782 = vmatmul.f32.gmra.mxu0 %v659
  %v783 = vpop.f32.mrf.mxu0
  %v784 = vadd.f32 0.0, %v783
  %785 = vmatmul.f32.gmra.mxu0 %v662
  %v786 = vpop.f32.mrf.mxu0
  %v787 = vadd.f32 0.0, %v786
  %788 = vmatmul.f32.gmra.mxu0 %v665
  %v789 = vpop.f32.mrf.mxu0
  %v790 = vadd.f32 0.0, %v789
  %791 = vmatmul.f32.gmra.mxu0 %v668
  %v792 = vpop.f32.mrf.mxu0
  %v793 = vadd.f32 0.0, %v792
  %794 = vmatmul.f32.gmra.mxu0 %v671
  %v795 = vpop.f32.mrf.mxu0
  %v796 = vadd.f32 0.0, %v795
  %797 = vmatmul.f32.gmra.mxu0 %v674
  %v798 = vpop.f32.mrf.mxu0
  %v799 = vadd.f32 0.0, %v798
  %800 = vmatmul.f32.gmra.mxu0 %v677
  %v801 = vpop.f32.mrf.mxu0
  %v802 = vadd.f32 0.0, %v801
  %803 = vmatmul.f32.gmra.mxu0 %v680
  %v804 = vpop.f32.mrf.mxu0
  %v805 = vadd.f32 0.0, %v804
  %806 = vmatmul.f32.gmra.mxu0 %v683
  %v807 = vpop.f32.mrf.mxu0
  %v808 = vadd.f32 0.0, %v807
  %809 = vmatmul.f32.gmra.mxu0 %v686
  %v810 = vpop.f32.mrf.mxu0
  %v811 = vadd.f32 0.0, %v810
  %812 = vmatmul.f32.gmra.mxu0 %v689
  %v813 = vpop.f32.mrf.mxu0
  %v814 = vadd.f32 0.0, %v813
  %815 = vmatmul.f32.gmra.mxu0 %v692
  %v816 = vpop.f32.mrf.mxu0
  %v817 = vadd.f32 0.0, %v816
  %818 = vmatmul.f32.gmra.mxu0 %v695
  %v819 = vpop.f32.mrf.mxu0
  %v820 = vadd.f32 0.0, %v819
  %821 = vmatmul.f32.gmra.mxu0 %v698
  %v822 = vpop.f32.mrf.mxu0
  %v823 = vadd.f32 0.0, %v822
  %824 = vmatmul.f32.gmra.mxu0 %v701
  %v825 = vpop.f32.mrf.mxu0
  %v826 = vadd.f32 0.0, %v825
  %827 = vdwg.mxu0
  %s828 = scalar_lea.vmem %s0, 864
  %v829 = vld [vmem:[%s828] sm:$0xff]
  %v830 = vld [vmem:[%s828 + $0x8] sm:$0xff]
  %v831 = vld [vmem:[%s828 + $0x10] sm:$0xff]
  %v832 = vld [vmem:[%s828 + $0x18] sm:$0xff]
  %v833 = vld [vmem:[%s828 + $0x20] sm:$0xff]
  %v834 = vld [vmem:[%s828 + $0x28] sm:$0xff]
  %v835 = vld [vmem:[%s828 + $0x30] sm:$0xff]
  %v836 = vld [vmem:[%s828 + $0x38] sm:$0xff]
  %v837 = vld [vmem:[%s828 + $0x40] sm:$0xff]
  %v838 = vld [vmem:[%s828 + $0x48] sm:$0xff]
  %v839 = vld [vmem:[%s828 + $0x50] sm:$0xff]
  %v840 = vld [vmem:[%s828 + $0x58] sm:$0xff]
  %v841 = vld [vmem:[%s828 + $0x60] sm:$0xff]
  %v842 = vld [vmem:[%s828 + $0x68] sm:$0xff]
  %v843 = vld [vmem:[%s828 + $0x70] sm:$0xff]
  %v844 = vld [vmem:[%s828 + $0x78] sm:$0xff]
  %v845 = vld [vmem:[%s828 + $0x80] sm:$0xff]
  %v846 = vld [vmem:[%s828 + $0x88] sm:$0xff]
  %v847 = vld [vmem:[%s828 + $0x90] sm:$0xff]
  %v848 = vld [vmem:[%s828 + $0x98] sm:$0xff]
  %v849 = vld [vmem:[%s828 + $0xa0] sm:$0xff]
  %v850 = vld [vmem:[%s828 + $0xa8] sm:$0xff]
  %v851 = vld [vmem:[%s828 + $0xb0] sm:$0xff]
  %v852 = vld [vmem:[%s828 + $0xb8] sm:$0xff]
  %v853 = vld [vmem:[%s828 + $0xc0] sm:$0xff]
  %v854 = vld [vmem:[%s828 + $0xc8] sm:$0xff]
  %v855 = vld [vmem:[%s828 + $0xd0] sm:$0xff]
  %v856 = vld [vmem:[%s828 + $0xd8] sm:$0xff]
  %v857 = vld [vmem:[%s828 + $0xe0] sm:$0xff]
  %v858 = vld [vmem:[%s828 + $0xe8] sm:$0xff]
  %v859 = vld [vmem:[%s828 + $0xf0] sm:$0xff]
  %v860 = vld [vmem:[%s828 + $0xf8] sm:$0xff]
  %v861 = vld [vmem:[%s828 + $0x100] sm:$0xff]
  %v862 = vld [vmem:[%s828 + $0x108] sm:$0xff]
  %v863 = vld [vmem:[%s828 + $0x110] sm:$0xff]
  %v864 = vld [vmem:[%s828 + $0x118] sm:$0xff]
  %v866 = vsel %vm54, %v829, 0
  %v869 = vsel %vm54, %v830, 0
  %v872 = vsel %vm54, %v831, 0
  %v875 = vsel %vm54, %v832, 0
  %v878 = vsel %vm54, %v833, 0
  %v881 = vsel %vm54, %v834, 0
  %v884 = vsel %vm54, %v835, 0
  %v887 = vsel %vm54, %v836, 0
  %v890 = vsel %vm54, %v837, 0
  %v893 = vsel %vm54, %v838, 0
  %v896 = vsel %vm54, %v839, 0
  %v899 = vsel %vm54, %v840, 0
  %v902 = vsel %vm54, %v841, 0
  %v905 = vsel %vm54, %v842, 0
  %v908 = vsel %vm54, %v843, 0
  %v911 = vsel %vm54, %v844, 0
  %v914 = vsel %vm54, %v845, 0
  %v917 = vsel %vm54, %v846, 0
  %v920 = vsel %vm54, %v847, 0
  %v923 = vsel %vm54, %v848, 0
  %v926 = vsel %vm54, %v849, 0
  %v929 = vsel %vm54, %v850, 0
  %v932 = vsel %vm54, %v851, 0
  %v935 = vsel %vm54, %v852, 0
  %v938 = vsel %vm54, %v853, 0
  %v941 = vsel %vm54, %v854, 0
  %v944 = vsel %vm54, %v855, 0
  %v947 = vsel %vm54, %v856, 0
  %v950 = vsel %vm54, %v857, 0
  %v953 = vsel %vm54, %v858, 0
  %v956 = vsel %vm54, %v859, 0
  %v959 = vsel %vm54, %v860, 0
  %v962 = vsel %vm54, %v861, 0
  %v965 = vsel %vm54, %v862, 0
  %v968 = vsel %vm54, %v863, 0
  %v971 = vsel %vm54, %v864, 0
  %973 = vmatpush.msra.mxu0 0.0
  %974 = vmatpush.msra.mxu0 0.0
  %975 = vmatpush.msra.mxu0 0.0
  %976 = vmatpush.msra.mxu0 0.0
  %977 = vmatpush.msra.mxu0 0.0
  %978 = vmatpush.msra.mxu0 0.0
  %979 = vmatpush.msra.mxu0 0.0
  %980 = vmatpush.msra.mxu0 0.0
  %981 = vmatpush.msra.mxu0 0.0
  %982 = vmatpush.msra.mxu0 0.0
  %983 = vmatpush.msra.mxu0 0.0
  %984 = vmatpush.msra.mxu0 0.0
  %985 = vmatpush.msra.mxu0 %v17
  %986 = vmatpush.msra.mxu0 %v16
  %987 = vmatpush.msra.mxu0 %v15
  %988 = vmatpush.msra.mxu0 %v14
  %989 = vmatmul.f32.gmra.mxu0 %v866
  %v990 = vpop.f32.mrf.mxu0
  %v991 = vadd.f32 0.0, %v990
  %992 = vmatmul.f32.gmra.mxu0 %v869
  %v993 = vpop.f32.mrf.mxu0
  %v994 = vadd.f32 0.0, %v993
  %995 = vmatmul.f32.gmra.mxu0 %v872
  %v996 = vpop.f32.mrf.mxu0
  %v997 = vadd.f32 0.0, %v996
  %998 = vmatmul.f32.gmra.mxu0 %v875
  %v999 = vpop.f32.mrf.mxu0
  %v1000 = vadd.f32 0.0, %v999
  %1001 = vmatmul.f32.gmra.mxu0 %v878
  %v1002 = vpop.f32.mrf.mxu0
  %v1003 = vadd.f32 0.0, %v1002
  %1004 = vmatmul.f32.gmra.mxu0 %v881
  %v1005 = vpop.f32.mrf.mxu0
  %v1006 = vadd.f32 0.0, %v1005
  %1007 = vmatmul.f32.gmra.mxu0 %v884
  %v1008 = vpop.f32.mrf.mxu0
  %v1009 = vadd.f32 0.0, %v1008
  %1010 = vmatmul.f32.gmra.mxu0 %v887
  %v1011 = vpop.f32.mrf.mxu0
  %v1012 = vadd.f32 0.0, %v1011
  %1013 = vmatmul.f32.gmra.mxu0 %v890
  %v1014 = vpop.f32.mrf.mxu0
  %v1015 = vadd.f32 0.0, %v1014
  %1016 = vmatmul.f32.gmra.mxu0 %v893
  %v1017 = vpop.f32.mrf.mxu0
  %v1018 = vadd.f32 0.0, %v1017
  %1019 = vmatmul.f32.gmra.mxu0 %v896
  %v1020 = vpop.f32.mrf.mxu0
  %v1021 = vadd.f32 0.0, %v1020
  %1022 = vmatmul.f32.gmra.mxu0 %v899
  %v1023 = vpop.f32.mrf.mxu0
  %v1024 = vadd.f32 0.0, %v1023
  %1025 = vmatmul.f32.gmra.mxu0 %v902
  %v1026 = vpop.f32.mrf.mxu0
  %v1027 = vadd.f32 0.0, %v1026
  %1028 = vmatmul.f32.gmra.mxu0 %v905
  %v1029 = vpop.f32.mrf.mxu0
  %v1030 = vadd.f32 0.0, %v1029
  %1031 = vmatmul.f32.gmra.mxu0 %v908
  %v1032 = vpop.f32.mrf.mxu0
  %v1033 = vadd.f32 0.0, %v1032
  %1034 = vmatmul.f32.gmra.mxu0 %v911
  %v1035 = vpop.f32.mrf.mxu0
  %v1036 = vadd.f32 0.0, %v1035
  %1037 = vmatmul.f32.gmra.mxu0 %v914
  %v1038 = vpop.f32.mrf.mxu0
  %v1039 = vadd.f32 0.0, %v1038
  %1040 = vmatmul.f32.gmra.mxu0 %v917
  %v1041 = vpop.f32.mrf.mxu0
  %v1042 = vadd.f32 0.0, %v1041
  %1043 = vmatmul.f32.gmra.mxu0 %v920
  %v1044 = vpop.f32.mrf.mxu0
  %v1045 = vadd.f32 0.0, %v1044
  %1046 = vmatmul.f32.gmra.mxu0 %v923
  %v1047 = vpop.f32.mrf.mxu0
  %v1048 = vadd.f32 0.0, %v1047
  %1049 = vmatmul.f32.gmra.mxu0 %v926
  %v1050 = vpop.f32.mrf.mxu0
  %v1051 = vadd.f32 0.0, %v1050
  %1052 = vmatmul.f32.gmra.mxu0 %v929
  %v1053 = vpop.f32.mrf.mxu0
  %v1054 = vadd.f32 0.0, %v1053
  %1055 = vmatmul.f32.gmra.mxu0 %v932
  %v1056 = vpop.f32.mrf.mxu0
  %v1057 = vadd.f32 0.0, %v1056
  %1058 = vmatmul.f32.gmra.mxu0 %v935
  %v1059 = vpop.f32.mrf.mxu0
  %v1060 = vadd.f32 0.0, %v1059
  %1061 = vmatmul.f32.gmra.mxu0 %v938
  %v1062 = vpop.f32.mrf.mxu0
  %v1063 = vadd.f32 0.0, %v1062
  %1064 = vmatmul.f32.gmra.mxu0 %v941
  %v1065 = vpop.f32.mrf.mxu0
  %v1066 = vadd.f32 0.0, %v1065
  %1067 = vmatmul.f32.gmra.mxu0 %v944
  %v1068 = vpop.f32.mrf.mxu0
  %v1069 = vadd.f32 0.0, %v1068
  %1070 = vmatmul.f32.gmra.mxu0 %v947
  %v1071 = vpop.f32.mrf.mxu0
  %v1072 = vadd.f32 0.0, %v1071
  %1073 = vmatmul.f32.gmra.mxu0 %v950
  %v1074 = vpop.f32.mrf.mxu0
  %v1075 = vadd.f32 0.0, %v1074
  %1076 = vmatmul.f32.gmra.mxu0 %v953
  %v1077 = vpop.f32.mrf.mxu0
  %v1078 = vadd.f32 0.0, %v1077
  %1079 = vmatmul.f32.gmra.mxu0 %v956
  %v1080 = vpop.f32.mrf.mxu0
  %v1081 = vadd.f32 0.0, %v1080
  %1082 = vmatmul.f32.gmra.mxu0 %v959
  %v1083 = vpop.f32.mrf.mxu0
  %v1084 = vadd.f32 0.0, %v1083
  %1085 = vmatmul.f32.gmra.mxu0 %v962
  %v1086 = vpop.f32.mrf.mxu0
  %v1087 = vadd.f32 0.0, %v1086
  %1088 = vmatmul.f32.gmra.mxu0 %v965
  %v1089 = vpop.f32.mrf.mxu0
  %v1090 = vadd.f32 0.0, %v1089
  %1091 = vmatmul.f32.gmra.mxu0 %v968
  %v1092 = vpop.f32.mrf.mxu0
  %v1093 = vadd.f32 0.0, %v1092
  %1094 = vmatmul.f32.gmra.mxu0 %v971
  %v1095 = vpop.f32.mrf.mxu0
  %v1096 = vadd.f32 0.0, %v1095
  %1097 = vdwg.mxu0
  %v1098 = vmax.f32 %v181, %v451
  %v1099 = vmax.f32 %v184, %v454
  %v1100 = vmax.f32 %v187, %v457
  %v1101 = vmax.f32 %v190, %v460
  %v1102 = vmax.f32 %v193, %v463
  %v1103 = vmax.f32 %v196, %v466
  %v1104 = vmax.f32 %v199, %v469
  %v1105 = vmax.f32 %v202, %v472
  %v1106 = vmax.f32 %v205, %v475
  %v1107 = vmax.f32 %v208, %v478
  %v1108 = vmax.f32 %v211, %v481
  %v1109 = vmax.f32 %v214, %v484
  %v1110 = vmax.f32 %v217, %v487
  %v1111 = vmax.f32 %v220, %v490
  %v1112 = vmax.f32 %v223, %v493
  %v1113 = vmax.f32 %v226, %v496
  %v1114 = vmax.f32 %v229, %v499
  %v1115 = vmax.f32 %v232, %v502
  %v1116 = vmax.f32 %v235, %v505
  %v1117 = vmax.f32 %v238, %v508
  %v1118 = vmax.f32 %v241, %v511
  %v1119 = vmax.f32 %v244, %v514
  %v1120 = vmax.f32 %v247, %v517
  %v1121 = vmax.f32 %v250, %v520
  %v1122 = vmax.f32 %v253, %v523
  %v1123 = vmax.f32 %v256, %v526
  %v1124 = vmax.f32 %v259, %v529
  %v1125 = vmax.f32 %v262, %v532
  %v1126 = vmax.f32 %v265, %v535
  %v1127 = vmax.f32 %v268, %v538
  %v1128 = vmax.f32 %v271, %v541
  %v1129 = vmax.f32 %v274, %v544
  %v1130 = vmax.f32 %v277, %v547
  %v1131 = vmax.f32 %v280, %v550
  %v1132 = vmax.f32 %v283, %v553
  %v1133 = vmax.f32 %v286, %v556
  %v1134 = vmax.f32 %v721, %v991
  %v1135 = vmax.f32 %v724, %v994
  %v1136 = vmax.f32 %v727, %v997
  %v1137 = vmax.f32 %v730, %v1000
  %v1138 = vmax.f32 %v733, %v1003
  %v1139 = vmax.f32 %v736, %v1006
  %v1140 = vmax.f32 %v739, %v1009
  %v1141 = vmax.f32 %v742, %v1012
  %v1142 = vmax.f32 %v745, %v1015
  %v1143 = vmax.f32 %v748, %v1018
  %v1144 = vmax.f32 %v751, %v1021
  %v1145 = vmax.f32 %v754, %v1024
  %v1146 = vmax.f32 %v757, %v1027
  %v1147 = vmax.f32 %v760, %v1030
  %v1148 = vmax.f32 %v763, %v1033
  %v1149 = vmax.f32 %v766, %v1036
  %v1150 = vmax.f32 %v769, %v1039
  %v1151 = vmax.f32 %v772, %v1042
  %v1152 = vmax.f32 %v775, %v1045
  %v1153 = vmax.f32 %v778, %v1048
  %v1154 = vmax.f32 %v781, %v1051
  %v1155 = vmax.f32 %v784, %v1054
  %v1156 = vmax.f32 %v787, %v1057
  %v1157 = vmax.f32 %v790, %v1060
  %v1158 = vmax.f32 %v793, %v1063
  %v1159 = vmax.f32 %v796, %v1066
  %v1160 = vmax.f32 %v799, %v1069
  %v1161 = vmax.f32 %v802, %v1072
  %v1162 = vmax.f32 %v805, %v1075
  %v1163 = vmax.f32 %v808, %v1078
  %v1164 = vmax.f32 %v811, %v1081
  %v1165 = vmax.f32 %v814, %v1084
  %v1166 = vmax.f32 %v817, %v1087
  %v1167 = vmax.f32 %v820, %v1090
  %v1168 = vmax.f32 %v823, %v1093
  %v1169 = vmax.f32 %v826, %v1096
  %v1170 = vmax.f32 %v1098, %v1134
  %v1171 = vmax.f32 %v1099, %v1135
  %v1172 = vmax.f32 %v1100, %v1136
  %v1173 = vmax.f32 %v1101, %v1137
  %v1174 = vmax.f32 %v1102, %v1138
  %v1175 = vmax.f32 %v1103, %v1139
  %v1176 = vmax.f32 %v1104, %v1140
  %v1177 = vmax.f32 %v1105, %v1141
  %v1178 = vmax.f32 %v1106, %v1142
  %v1179 = vmax.f32 %v1107, %v1143
  %v1180 = vmax.f32 %v1108, %v1144
  %v1181 = vmax.f32 %v1109, %v1145
  %v1182 = vmax.f32 %v1110, %v1146
  %v1183 = vmax.f32 %v1111, %v1147
  %v1184 = vmax.f32 %v1112, %v1148
  %v1185 = vmax.f32 %v1113, %v1149
  %v1186 = vmax.f32 %v1114, %v1150
  %v1187 = vmax.f32 %v1115, %v1151
  %v1188 = vmax.f32 %v1116, %v1152
  %v1189 = vmax.f32 %v1117, %v1153
  %v1190 = vmax.f32 %v1118, %v1154
  %v1191 = vmax.f32 %v1119, %v1155
  %v1192 = vmax.f32 %v1120, %v1156
  %v1193 = vmax.f32 %v1121, %v1157
  %v1194 = vmax.f32 %v1122, %v1158
  %v1195 = vmax.f32 %v1123, %v1159
  %v1196 = vmax.f32 %v1124, %v1160
  %v1197 = vmax.f32 %v1125, %v1161
  %v1198 = vmax.f32 %v1126, %v1162
  %v1199 = vmax.f32 %v1127, %v1163
  %v1200 = vmax.f32 %v1128, %v1164
  %v1201 = vmax.f32 %v1129, %v1165
  %v1202 = vmax.f32 %v1130, %v1166
  %v1203 = vmax.f32 %v1131, %v1167
  %v1204 = vmax.f32 %v1132, %v1168
  %v1205 = vmax.f32 %v1133, %v1169
  %v1206 = vld [vmem:[%s2] sm:$0x1]
  %v1208 = vperm.slane %v1206, 0
  %v1210 = vadd.f32 %v1170, %v1208
  %v1211 = vadd.f32 %v1171, %v1208
  %v1212 = vadd.f32 %v1172, %v1208
  %v1213 = vadd.f32 %v1173, %v1208
  %v1214 = vadd.f32 %v1174, %v1208
  %v1215 = vadd.f32 %v1175, %v1208
  %v1216 = vadd.f32 %v1176, %v1208
  %v1217 = vadd.f32 %v1177, %v1208
  %v1218 = vadd.f32 %v1178, %v1208
  %v1219 = vadd.f32 %v1179, %v1208
  %v1220 = vadd.f32 %v1180, %v1208
  %v1221 = vadd.f32 %v1181, %v1208
  %v1222 = vadd.f32 %v1182, %v1208
  %v1223 = vadd.f32 %v1183, %v1208
  %v1224 = vadd.f32 %v1184, %v1208
  %v1225 = vadd.f32 %v1185, %v1208
  %v1226 = vadd.f32 %v1186, %v1208
  %v1227 = vadd.f32 %v1187, %v1208
  %v1228 = vadd.f32 %v1188, %v1208
  %v1229 = vadd.f32 %v1189, %v1208
  %v1230 = vadd.f32 %v1190, %v1208
  %v1231 = vadd.f32 %v1191, %v1208
  %v1232 = vadd.f32 %v1192, %v1208
  %v1233 = vadd.f32 %v1193, %v1208
  %v1234 = vadd.f32 %v1194, %v1208
  %v1235 = vadd.f32 %v1195, %v1208
  %v1236 = vadd.f32 %v1196, %v1208
  %v1237 = vadd.f32 %v1197, %v1208
  %v1238 = vadd.f32 %v1198, %v1208
  %v1239 = vadd.f32 %v1199, %v1208
  %v1240 = vadd.f32 %v1200, %v1208
  %v1241 = vadd.f32 %v1201, %v1208
  %v1242 = vadd.f32 %v1202, %v1208
  %v1243 = vadd.f32 %v1203, %v1208
  %v1244 = vadd.f32 %v1204, %v1208
  %v1245 = vadd.f32 %v1205, %v1208
  %v1246 = vmax.f32 %v1210, 0.0
  %v1247 = vmax.f32 %v1211, 0.0
  %v1248 = vmax.f32 %v1212, 0.0
  %v1249 = vmax.f32 %v1213, 0.0
  %v1250 = vmax.f32 %v1214, 0.0
  %v1251 = vmax.f32 %v1215, 0.0
  %v1252 = vmax.f32 %v1216, 0.0
  %v1253 = vmax.f32 %v1217, 0.0
  %v1254 = vmax.f32 %v1218, 0.0
  %v1255 = vmax.f32 %v1219, 0.0
  %v1256 = vmax.f32 %v1220, 0.0
  %v1257 = vmax.f32 %v1221, 0.0
  %v1258 = vmax.f32 %v1222, 0.0
  %v1259 = vmax.f32 %v1223, 0.0
  %v1260 = vmax.f32 %v1224, 0.0
  %v1261 = vmax.f32 %v1225, 0.0
  %v1262 = vmax.f32 %v1226, 0.0
  %v1263 = vmax.f32 %v1227, 0.0
  %v1264 = vmax.f32 %v1228, 0.0
  %v1265 = vmax.f32 %v1229, 0.0
  %v1266 = vmax.f32 %v1230, 0.0
  %v1267 = vmax.f32 %v1231, 0.0
  %v1268 = vmax.f32 %v1232, 0.0
  %v1269 = vmax.f32 %v1233, 0.0
  %v1270 = vmax.f32 %v1234, 0.0
  %v1271 = vmax.f32 %v1235, 0.0
  %v1272 = vmax.f32 %v1236, 0.0
  %v1273 = vmax.f32 %v1237, 0.0
  %v1274 = vmax.f32 %v1238, 0.0
  %v1275 = vmax.f32 %v1239, 0.0
  %v1276 = vmax.f32 %v1240, 0.0
  %v1277 = vmax.f32 %v1241, 0.0
  %v1278 = vmax.f32 %v1242, 0.0
  %v1279 = vmax.f32 %v1243, 0.0
  %v1280 = vmax.f32 %v1244, 0.0
  %v1281 = vmax.f32 %v1245, 0.0
  %1282 = vst [vmem:[%s3] sm:$0xff] %v1246
  %1283 = vst [vmem:[%s3 + $0x8] sm:$0xff] %v1247
  %1284 = vst [vmem:[%s3 + $0x10] sm:$0xff] %v1248
  %1285 = vst [vmem:[%s3 + $0x18] sm:$0xff] %v1249
  %1286 = vst [vmem:[%s3 + $0x20] sm:$0xff] %v1250
  %1287 = vst [vmem:[%s3 + $0x28] sm:$0xff] %v1251
  %1288 = vst [vmem:[%s3 + $0x30] sm:$0xff] %v1252
  %1289 = vst [vmem:[%s3 + $0x38] sm:$0xff] %v1253
  %1290 = vst [vmem:[%s3 + $0x40] sm:$0xff] %v1254
  %1291 = vst [vmem:[%s3 + $0x48] sm:$0xff] %v1255
  %1292 = vst [vmem:[%s3 + $0x50] sm:$0xff] %v1256
  %1293 = vst [vmem:[%s3 + $0x58] sm:$0xff] %v1257
  %1294 = vst [vmem:[%s3 + $0x60] sm:$0xff] %v1258
  %1295 = vst [vmem:[%s3 + $0x68] sm:$0xff] %v1259
  %1296 = vst [vmem:[%s3 + $0x70] sm:$0xff] %v1260
  %1297 = vst [vmem:[%s3 + $0x78] sm:$0xff] %v1261
  %1298 = vst [vmem:[%s3 + $0x80] sm:$0xff] %v1262
  %1299 = vst [vmem:[%s3 + $0x88] sm:$0xff] %v1263
  %1300 = vst [vmem:[%s3 + $0x90] sm:$0xff] %v1264
  %1301 = vst [vmem:[%s3 + $0x98] sm:$0xff] %v1265
  %1302 = vst [vmem:[%s3 + $0xa0] sm:$0xff] %v1266
  %1303 = vst [vmem:[%s3 + $0xa8] sm:$0xff] %v1267
  %1304 = vst [vmem:[%s3 + $0xb0] sm:$0xff] %v1268
  %1305 = vst [vmem:[%s3 + $0xb8] sm:$0xff] %v1269
  %1306 = vst [vmem:[%s3 + $0xc0] sm:$0xff] %v1270
  %1307 = vst [vmem:[%s3 + $0xc8] sm:$0xff] %v1271
  %1308 = vst [vmem:[%s3 + $0xd0] sm:$0xff] %v1272
  %1309 = vst [vmem:[%s3 + $0xd8] sm:$0xff] %v1273
  %1310 = vst [vmem:[%s3 + $0xe0] sm:$0xff] %v1274
  %1311 = vst [vmem:[%s3 + $0xe8] sm:$0xff] %v1275
  %1312 = vst [vmem:[%s3 + $0xf0] sm:$0xff] %v1276
  %1313 = vst [vmem:[%s3 + $0xf8] sm:$0xff] %v1277
  %1314 = vst [vmem:[%s3 + $0x100] sm:$0xff] %v1278
  %1315 = vst [vmem:[%s3 + $0x108] sm:$0xff] %v1279
  %1316 = vst [vmem:[%s3 + $0x110] sm:$0xff] %v1280
  %1317 = vst [vmem:[%s3 + $0x118] sm:$0xff] %v1281
  // Predicated region
  $region14: #{submodel_forward.3} parent=0 // pred_check
    _
  $region15: #{submodel_forward.3} parent=0 // pred_check_branch
    %1319 = sbr.rel (0) target = $region17
  $region16: #{submodel_forward.3} parent=0 // pred_region
    _
  $region17: #{submodel_forward.3} parent=0 // pred_fallthru
    _
  // Predicated region
  $region18: #{submodel_forward.3} parent=0 // pred_check
    _
  $region19: #{submodel_forward.3} parent=0 // pred_check_branch
    %1321 = sbr.rel (0) target = $region21
  $region20: #{submodel_forward.3} parent=0 // pred_region
    _
  $region21: #{submodel_forward.3} parent=0 // pred_fallthru
    _

// kernel: submodel_forward.4
$region0: #{submodel_forward.4}
  #allocation0 [shape = 'u32[]', space=smem, size = 0x4, offset = 0x4, fixed_abs, tag = 'smem constant byte address 0x4 - core index']
  #allocation1 [shape = 'u32[72,128]{1,0:T(1,128)}', space=vmem, size = 0x9000, scoped, tag = 'internal scratch']
  %s0 = inlined_call_operand.vmem [shape: f32[4,32,256], index: 0, kind: input, shape index: {}]
  %s1 = inlined_call_operand.vmem [shape: f32[256,128], index: 1, kind: input, shape index: {}]
  %s2 = inlined_call_operand.vmem [shape: f32[1,128], index: 2, kind: input, shape index: {}]
  %s3 = inlined_call_operand.vmem [shape: f32[32,128], index: 3, kind: output, shape index: {}]
  %s4 = sld [smem:[#allocation0]]
  $region22: #{submodel_forward.4} parent=0
    _
  %s6 = ssub.s32 1, %s4
  %s7 = scalar_select 0, %s6, %s4
  // Predicated region
  $region2: #{submodel_forward.4} parent=0 // pred_check
    _
  $region3: #{submodel_forward.4} parent=0 // pred_check_branch
    %9 = sbr.rel (0) target = $region5
  $region4: #{submodel_forward.4} parent=0 // pred_region
    _
  $region5: #{submodel_forward.4} parent=0 // pred_fallthru
    _
  // Predicated region
  $region6: #{submodel_forward.4} parent=0 // pred_check
    _
  $region7: #{submodel_forward.4} parent=0 // pred_check_branch
    %11 = sbr.rel (0) target = $region9
  $region8: #{submodel_forward.4} parent=0 // pred_region
    _
  $region9: #{submodel_forward.4} parent=0 // pred_fallthru
    _
  // Predicated region
  $region10: #{submodel_forward.4} parent=0 // pred_check
    _
  $region11: #{submodel_forward.4} parent=0 // pred_check_branch
    %13 = sbr.rel (0) target = $region13
  $region12: #{submodel_forward.4} parent=0 // pred_region
    _
  $region13: #{submodel_forward.4} parent=0 // pred_fallthru
    _
  %v14 = vld [vmem:[%s1] sm:$0xff]
  %v15 = vld [vmem:[%s1 + $0x8] sm:$0xff]
  %v16 = vld [vmem:[%s1 + $0x10] sm:$0xff]
  %v17 = vld [vmem:[%s1 + $0x18] sm:$0xff]
  %v18 = vld [vmem:[%s1 + $0x20] sm:$0xff]
  %v19 = vld [vmem:[%s1 + $0x28] sm:$0xff]
  %v20 = vld [vmem:[%s1 + $0x30] sm:$0xff]
  %v21 = vld [vmem:[%s1 + $0x38] sm:$0xff]
  %v22 = vld [vmem:[%s1 + $0x40] sm:$0xff]
  %v23 = vld [vmem:[%s1 + $0x48] sm:$0xff]
  %v24 = vld [vmem:[%s1 + $0x50] sm:$0xff]
  %v25 = vld [vmem:[%s1 + $0x58] sm:$0xff]
  %v26 = vld [vmem:[%s1 + $0x60] sm:$0xff]
  %v27 = vld [vmem:[%s1 + $0x68] sm:$0xff]
  %v28 = vld [vmem:[%s1 + $0x70] sm:$0xff]
  %v29 = vld [vmem:[%s1 + $0x78] sm:$0xff]
  %v30 = vld [vmem:[%s1 + $0x80] sm:$0xff]
  %v31 = vld [vmem:[%s1 + $0x88] sm:$0xff]
  %v32 = vld [vmem:[%s1 + $0x90] sm:$0xff]
  %v33 = vld [vmem:[%s1 + $0x98] sm:$0xff]
  %v34 = vld [vmem:[%s1 + $0xa0] sm:$0xff]
  %v35 = vld [vmem:[%s1 + $0xa8] sm:$0xff]
  %v36 = vld [vmem:[%s1 + $0xb0] sm:$0xff]
  %v37 = vld [vmem:[%s1 + $0xb8] sm:$0xff]
  %v38 = vld [vmem:[%s1 + $0xc0] sm:$0xff]
  %v39 = vld [vmem:[%s1 + $0xc8] sm:$0xff]
  %v40 = vld [vmem:[%s1 + $0xd0] sm:$0xff]
  %v41 = vld [vmem:[%s1 + $0xd8] sm:$0xff]
  %v42 = vld [vmem:[%s1 + $0xe0] sm:$0xff]
  %v43 = vld [vmem:[%s1 + $0xe8] sm:$0xff]
  %v44 = vld [vmem:[%s1 + $0xf0] sm:$0xff]
  %v45 = vld [vmem:[%s1 + $0xf8] sm:$0xff]
  %v46 = vld [vmem:[%s0] sm:$0xff]
  %v47 = vld [vmem:[%s0 + $0x8] sm:$0xff]
  %v48 = vld [vmem:[%s0 + $0x10] sm:$0xff]
  %v49 = vld [vmem:[%s0 + $0x18] sm:$0xff]
  %v50 = vld [vmem:[%s0 + $0x20] sm:$0xff]
  %v51 = vld [vmem:[%s0 + $0x28] sm:$0xff]
  %v52 = vld [vmem:[%s0 + $0x30] sm:$0xff]
  %v53 = vld [vmem:[%s0 + $0x38] sm:$0xff]
  %54 = vmatpush.msra.mxu0 %v29
  %55 = vmatpush.msra.mxu0 %v28
  %56 = vmatpush.msra.mxu0 %v27
  %57 = vmatpush.msra.mxu0 %v26
  %58 = vmatpush.msra.mxu0 %v25
  %59 = vmatpush.msra.mxu0 %v24
  %60 = vmatpush.msra.mxu0 %v23
  %61 = vmatpush.msra.mxu0 %v22
  %62 = vmatpush.msra.mxu0 %v21
  %63 = vmatpush.msra.mxu0 %v20
  %64 = vmatpush.msra.mxu0 %v19
  %65 = vmatpush.msra.mxu0 %v18
  %66 = vmatpush.msra.mxu0 %v17
  %67 = vmatpush.msra.mxu0 %v16
  %68 = vmatpush.msra.mxu0 %v15
  %69 = vmatpush.msra.mxu0 %v14
  %70 = vmatmul.f32.gmra.mxu0 %v46
  %v71 = vpop.f32.mrf.mxu0
  %v72 = vadd.f32 0.0, %v71
  %73 = vmatmul.f32.gmra.mxu0 %v48
  %v74 = vpop.f32.mrf.mxu0
  %v75 = vadd.f32 0.0, %v74
  %76 = vmatmul.f32.gmra.mxu0 %v50
  %v77 = vpop.f32.mrf.mxu0
  %v78 = vadd.f32 0.0, %v77
  %79 = vmatmul.f32.gmra.mxu0 %v52
  %v80 = vpop.f32.mrf.mxu0
  %v81 = vadd.f32 0.0, %v80
  %82 = vdwg.mxu0
  %83 = vmatpush.msra.mxu0 %v45
  %84 = vmatpush.msra.mxu0 %v44
  %85 = vmatpush.msra.mxu0 %v43
  %86 = vmatpush.msra.mxu0 %v42
  %87 = vmatpush.msra.mxu0 %v41
  %88 = vmatpush.msra.mxu0 %v40
  %89 = vmatpush.msra.mxu0 %v39
  %90 = vmatpush.msra.mxu0 %v38
  %91 = vmatpush.msra.mxu0 %v37
  %92 = vmatpush.msra.mxu0 %v36
  %93 = vmatpush.msra.mxu0 %v35
  %94 = vmatpush.msra.mxu0 %v34
  %95 = vmatpush.msra.mxu0 %v33
  %96 = vmatpush.msra.mxu0 %v32
  %97 = vmatpush.msra.mxu0 %v31
  %98 = vmatpush.msra.mxu0 %v30
  %99 = vmatmul.f32.gmra.mxu0 %v47
  %v100 = vpop.f32.mrf.mxu0
  %v101 = vadd.f32 %v72, %v100
  %102 = vmatmul.f32.gmra.mxu0 %v49
  %v103 = vpop.f32.mrf.mxu0
  %v104 = vadd.f32 %v75, %v103
  %105 = vmatmul.f32.gmra.mxu0 %v51
  %v106 = vpop.f32.mrf.mxu0
  %v107 = vadd.f32 %v78, %v106
  %108 = vmatmul.f32.gmra.mxu0 %v53
  %v109 = vpop.f32.mrf.mxu0
  %v110 = vadd.f32 %v81, %v109
  %111 = vdwg.mxu0
  %s112 = scalar_lea.vmem %s0, 64
  %v113 = vld [vmem:[%s112] sm:$0xff]
  %v114 = vld [vmem:[%s112 + $0x8] sm:$0xff]
  %v115 = vld [vmem:[%s112 + $0x10] sm:$0xff]
  %v116 = vld [vmem:[%s112 + $0x18] sm:$0xff]
  %v117 = vld [vmem:[%s112 + $0x20] sm:$0xff]
  %v118 = vld [vmem:[%s112 + $0x28] sm:$0xff]
  %v119 = vld [vmem:[%s112 + $0x30] sm:$0xff]
  %v120 = vld [vmem:[%s112 + $0x38] sm:$0xff]
  %121 = vmatpush.msra.mxu0 %v29
  %122 = vmatpush.msra.mxu0 %v28
  %123 = vmatpush.msra.mxu0 %v27
  %124 = vmatpush.msra.mxu0 %v26
  %125 = vmatpush.msra.mxu0 %v25
  %126 = vmatpush.msra.mxu0 %v24
  %127 = vmatpush.msra.mxu0 %v23
  %128 = vmatpush.msra.mxu0 %v22
  %129 = vmatpush.msra.mxu0 %v21
  %130 = vmatpush.msra.mxu0 %v20
  %131 = vmatpush.msra.mxu0 %v19
  %132 = vmatpush.msra.mxu0 %v18
  %133 = vmatpush.msra.mxu0 %v17
  %134 = vmatpush.msra.mxu0 %v16
  %135 = vmatpush.msra.mxu0 %v15
  %136 = vmatpush.msra.mxu0 %v14
  %137 = vmatmul.f32.gmra.mxu0 %v113
  %v138 = vpop.f32.mrf.mxu0
  %v139 = vadd.f32 0.0, %v138
  %140 = vmatmul.f32.gmra.mxu0 %v115
  %v141 = vpop.f32.mrf.mxu0
  %v142 = vadd.f32 0.0, %v141
  %143 = vmatmul.f32.gmra.mxu0 %v117
  %v144 = vpop.f32.mrf.mxu0
  %v145 = vadd.f32 0.0, %v144
  %146 = vmatmul.f32.gmra.mxu0 %v119
  %v147 = vpop.f32.mrf.mxu0
  %v148 = vadd.f32 0.0, %v147
  %149 = vdwg.mxu0
  %150 = vmatpush.msra.mxu0 %v45
  %151 = vmatpush.msra.mxu0 %v44
  %152 = vmatpush.msra.mxu0 %v43
  %153 = vmatpush.msra.mxu0 %v42
  %154 = vmatpush.msra.mxu0 %v41
  %155 = vmatpush.msra.mxu0 %v40
  %156 = vmatpush.msra.mxu0 %v39
  %157 = vmatpush.msra.mxu0 %v38
  %158 = vmatpush.msra.mxu0 %v37
  %159 = vmatpush.msra.mxu0 %v36
  %160 = vmatpush.msra.mxu0 %v35
  %161 = vmatpush.msra.mxu0 %v34
  %162 = vmatpush.msra.mxu0 %v33
  %163 = vmatpush.msra.mxu0 %v32
  %164 = vmatpush.msra.mxu0 %v31
  %165 = vmatpush.msra.mxu0 %v30
  %166 = vmatmul.f32.gmra.mxu0 %v114
  %v167 = vpop.f32.mrf.mxu0
  %v168 = vadd.f32 %v139, %v167
  %169 = vmatmul.f32.gmra.mxu0 %v116
  %v170 = vpop.f32.mrf.mxu0
  %v171 = vadd.f32 %v142, %v170
  %172 = vmatmul.f32.gmra.mxu0 %v118
  %v173 = vpop.f32.mrf.mxu0
  %v174 = vadd.f32 %v145, %v173
  %175 = vmatmul.f32.gmra.mxu0 %v120
  %v176 = vpop.f32.mrf.mxu0
  %v177 = vadd.f32 %v148, %v176
  %178 = vdwg.mxu0
  %s179 = scalar_lea.vmem %s0, 128
  %v180 = vld [vmem:[%s179] sm:$0xff]
  %v181 = vld [vmem:[%s179 + $0x8] sm:$0xff]
  %v182 = vld [vmem:[%s179 + $0x10] sm:$0xff]
  %v183 = vld [vmem:[%s179 + $0x18] sm:$0xff]
  %v184 = vld [vmem:[%s179 + $0x20] sm:$0xff]
  %v185 = vld [vmem:[%s179 + $0x28] sm:$0xff]
  %v186 = vld [vmem:[%s179 + $0x30] sm:$0xff]
  %v187 = vld [vmem:[%s179 + $0x38] sm:$0xff]
  %188 = vmatpush.msra.mxu0 %v29
  %189 = vmatpush.msra.mxu0 %v28
  %190 = vmatpush.msra.mxu0 %v27
  %191 = vmatpush.msra.mxu0 %v26
  %192 = vmatpush.msra.mxu0 %v25
  %193 = vmatpush.msra.mxu0 %v24
  %194 = vmatpush.msra.mxu0 %v23
  %195 = vmatpush.msra.mxu0 %v22
  %196 = vmatpush.msra.mxu0 %v21
  %197 = vmatpush.msra.mxu0 %v20
  %198 = vmatpush.msra.mxu0 %v19
  %199 = vmatpush.msra.mxu0 %v18
  %200 = vmatpush.msra.mxu0 %v17
  %201 = vmatpush.msra.mxu0 %v16
  %202 = vmatpush.msra.mxu0 %v15
  %203 = vmatpush.msra.mxu0 %v14
  %204 = vmatmul.f32.gmra.mxu0 %v180
  %v205 = vpop.f32.mrf.mxu0
  %v206 = vadd.f32 0.0, %v205
  %207 = vmatmul.f32.gmra.mxu0 %v182
  %v208 = vpop.f32.mrf.mxu0
  %v209 = vadd.f32 0.0, %v208
  %210 = vmatmul.f32.gmra.mxu0 %v184
  %v211 = vpop.f32.mrf.mxu0
  %v212 = vadd.f32 0.0, %v211
  %213 = vmatmul.f32.gmra.mxu0 %v186
  %v214 = vpop.f32.mrf.mxu0
  %v215 = vadd.f32 0.0, %v214
  %216 = vdwg.mxu0
  %217 = vmatpush.msra.mxu0 %v45
  %218 = vmatpush.msra.mxu0 %v44
  %219 = vmatpush.msra.mxu0 %v43
  %220 = vmatpush.msra.mxu0 %v42
  %221 = vmatpush.msra.mxu0 %v41
  %222 = vmatpush.msra.mxu0 %v40
  %223 = vmatpush.msra.mxu0 %v39
  %224 = vmatpush.msra.mxu0 %v38
  %225 = vmatpush.msra.mxu0 %v37
  %226 = vmatpush.msra.mxu0 %v36
  %227 = vmatpush.msra.mxu0 %v35
  %228 = vmatpush.msra.mxu0 %v34
  %229 = vmatpush.msra.mxu0 %v33
  %230 = vmatpush.msra.mxu0 %v32
  %231 = vmatpush.msra.mxu0 %v31
  %232 = vmatpush.msra.mxu0 %v30
  %233 = vmatmul.f32.gmra.mxu0 %v181
  %v234 = vpop.f32.mrf.mxu0
  %v235 = vadd.f32 %v206, %v234
  %236 = vmatmul.f32.gmra.mxu0 %v183
  %v237 = vpop.f32.mrf.mxu0
  %v238 = vadd.f32 %v209, %v237
  %239 = vmatmul.f32.gmra.mxu0 %v185
  %v240 = vpop.f32.mrf.mxu0
  %v241 = vadd.f32 %v212, %v240
  %242 = vmatmul.f32.gmra.mxu0 %v187
  %v243 = vpop.f32.mrf.mxu0
  %v244 = vadd.f32 %v215, %v243
  %245 = vdwg.mxu0
  %s246 = scalar_lea.vmem %s0, 192
  %v247 = vld [vmem:[%s246] sm:$0xff]
  %v248 = vld [vmem:[%s246 + $0x8] sm:$0xff]
  %v249 = vld [vmem:[%s246 + $0x10] sm:$0xff]
  %v250 = vld [vmem:[%s246 + $0x18] sm:$0xff]
  %v251 = vld [vmem:[%s246 + $0x20] sm:$0xff]
  %v252 = vld [vmem:[%s246 + $0x28] sm:$0xff]
  %v253 = vld [vmem:[%s246 + $0x30] sm:$0xff]
  %v254 = vld [vmem:[%s246 + $0x38] sm:$0xff]
  %255 = vmatpush.msra.mxu0 %v29
  %256 = vmatpush.msra.mxu0 %v28
  %257 = vmatpush.msra.mxu0 %v27
  %258 = vmatpush.msra.mxu0 %v26
  %259 = vmatpush.msra.mxu0 %v25
  %260 = vmatpush.msra.mxu0 %v24
  %261 = vmatpush.msra.mxu0 %v23
  %262 = vmatpush.msra.mxu0 %v22
  %263 = vmatpush.msra.mxu0 %v21
  %264 = vmatpush.msra.mxu0 %v20
  %265 = vmatpush.msra.mxu0 %v19
  %266 = vmatpush.msra.mxu0 %v18
  %267 = vmatpush.msra.mxu0 %v17
  %268 = vmatpush.msra.mxu0 %v16
  %269 = vmatpush.msra.mxu0 %v15
  %270 = vmatpush.msra.mxu0 %v14
  %271 = vmatmul.f32.gmra.mxu0 %v247
  %v272 = vpop.f32.mrf.mxu0
  %v273 = vadd.f32 0.0, %v272
  %274 = vmatmul.f32.gmra.mxu0 %v249
  %v275 = vpop.f32.mrf.mxu0
  %v276 = vadd.f32 0.0, %v275
  %277 = vmatmul.f32.gmra.mxu0 %v251
  %v278 = vpop.f32.mrf.mxu0
  %v279 = vadd.f32 0.0, %v278
  %280 = vmatmul.f32.gmra.mxu0 %v253
  %v281 = vpop.f32.mrf.mxu0
  %v282 = vadd.f32 0.0, %v281
  %283 = vdwg.mxu0
  %284 = vmatpush.msra.mxu0 %v45
  %285 = vmatpush.msra.mxu0 %v44
  %286 = vmatpush.msra.mxu0 %v43
  %287 = vmatpush.msra.mxu0 %v42
  %288 = vmatpush.msra.mxu0 %v41
  %289 = vmatpush.msra.mxu0 %v40
  %290 = vmatpush.msra.mxu0 %v39
  %291 = vmatpush.msra.mxu0 %v38
  %292 = vmatpush.msra.mxu0 %v37
  %293 = vmatpush.msra.mxu0 %v36
  %294 = vmatpush.msra.mxu0 %v35
  %295 = vmatpush.msra.mxu0 %v34
  %296 = vmatpush.msra.mxu0 %v33
  %297 = vmatpush.msra.mxu0 %v32
  %298 = vmatpush.msra.mxu0 %v31
  %299 = vmatpush.msra.mxu0 %v30
  %300 = vmatmul.f32.gmra.mxu0 %v248
  %v301 = vpop.f32.mrf.mxu0
  %v302 = vadd.f32 %v273, %v301
  %303 = vmatmul.f32.gmra.mxu0 %v250
  %v304 = vpop.f32.mrf.mxu0
  %v305 = vadd.f32 %v276, %v304
  %306 = vmatmul.f32.gmra.mxu0 %v252
  %v307 = vpop.f32.mrf.mxu0
  %v308 = vadd.f32 %v279, %v307
  %309 = vmatmul.f32.gmra.mxu0 %v254
  %v310 = vpop.f32.mrf.mxu0
  %v311 = vadd.f32 %v282, %v310
  %312 = vdwg.mxu0
  %v313 = vmax.f32 %v101, %v168
  %v314 = vmax.f32 %v104, %v171
  %v315 = vmax.f32 %v107, %v174
  %v316 = vmax.f32 %v110, %v177
  %v317 = vmax.f32 %v235, %v302
  %v318 = vmax.f32 %v238, %v305
  %v319 = vmax.f32 %v241, %v308
  %v320 = vmax.f32 %v244, %v311
  %v321 = vmax.f32 %v313, %v317
  %v322 = vmax.f32 %v314, %v318
  %v323 = vmax.f32 %v315, %v319
  %v324 = vmax.f32 %v316, %v320
  %v325 = vld [vmem:[%s2] sm:$0x1]
  %v327 = vperm.slane %v325, 0
  %v329 = vadd.f32 %v321, %v327
  %v330 = vadd.f32 %v322, %v327
  %v331 = vadd.f32 %v323, %v327
  %v332 = vadd.f32 %v324, %v327
  %v333 = vmax.f32 %v329, 0.0
  %v334 = vmax.f32 %v330, 0.0
  %v335 = vmax.f32 %v331, 0.0
  %v336 = vmax.f32 %v332, 0.0
  %337 = vst [vmem:[%s3] sm:$0xff] %v333
  %338 = vst [vmem:[%s3 + $0x8] sm:$0xff] %v334
  %339 = vst [vmem:[%s3 + $0x10] sm:$0xff] %v335
  %340 = vst [vmem:[%s3 + $0x18] sm:$0xff] %v336
  // Predicated region
  $region14: #{submodel_forward.4} parent=0 // pred_check
    _
  $region15: #{submodel_forward.4} parent=0 // pred_check_branch
    %342 = sbr.rel (0) target = $region17
  $region16: #{submodel_forward.4} parent=0 // pred_region
    _
  $region17: #{submodel_forward.4} parent=0 // pred_fallthru
    _
  // Predicated region
  $region18: #{submodel_forward.4} parent=0 // pred_check
    _
  $region19: #{submodel_forward.4} parent=0 // pred_check_branch
    %344 = sbr.rel (0) target = $region21
  $region20: #{submodel_forward.4} parent=0 // pred_region
    _
  $region21: #{submodel_forward.4} parent=0 // pred_fallthru
    _

// kernel: submodel_forward.5
$region0: #{submodel_forward.5}
  #allocation0 [shape = 'u32[]', space=smem, size = 0x4, offset = 0x4, fixed_abs, tag = 'smem constant byte address 0x4 - core index']
  #allocation1 [shape = 'u32[72,128]{1,0:T(1,128)}', space=vmem, size = 0x9000, scoped, tag = 'internal scratch']
  %s0 = inlined_call_operand.vmem [shape: f32[8,320], index: 0, kind: input, shape index: {}]
  %s1 = inlined_call_operand.vmem [shape: f32[320,128], index: 1, kind: input, shape index: {}]
  %s2 = inlined_call_operand.vmem [shape: f32[1,128], index: 2, kind: input, shape index: {}]
  %s3 = inlined_call_operand.vmem [shape: f32[8,128], index: 3, kind: output, shape index: {}]
  %s4 = sld [smem:[#allocation0]]
  $region22: #{submodel_forward.5} parent=0
    _
  %s6 = ssub.s32 1, %s4
  %s7 = scalar_select 0, %s6, %s4
  // Predicated region
  $region2: #{submodel_forward.5} parent=0 // pred_check
    _
  $region3: #{submodel_forward.5} parent=0 // pred_check_branch
    %9 = sbr.rel (0) target = $region5
  $region4: #{submodel_forward.5} parent=0 // pred_region
    _
  $region5: #{submodel_forward.5} parent=0 // pred_fallthru
    _
  // Predicated region
  $region6: #{submodel_forward.5} parent=0 // pred_check
    _
  $region7: #{submodel_forward.5} parent=0 // pred_check_branch
    %11 = sbr.rel (0) target = $region9
  $region8: #{submodel_forward.5} parent=0 // pred_region
    _
  $region9: #{submodel_forward.5} parent=0 // pred_fallthru
    _
  // Predicated region
  $region10: #{submodel_forward.5} parent=0 // pred_check
    _
  $region11: #{submodel_forward.5} parent=0 // pred_check_branch
    %13 = sbr.rel (0) target = $region13
  $region12: #{submodel_forward.5} parent=0 // pred_region
    _
  $region13: #{submodel_forward.5} parent=0 // pred_fallthru
    _
  %v14 = vld [vmem:[%s0] sm:$0xff]
  %v15 = vld [vmem:[%s0 + $0x8] sm:$0xff]
  %v16 = vld [vmem:[%s0 + $0x10] sm:$0xff]
  %v17 = vld [vmem:[%s1] sm:$0xff]
  %v18 = vld [vmem:[%s1 + $0x8] sm:$0xff]
  %v19 = vld [vmem:[%s1 + $0x10] sm:$0xff]
  %v20 = vld [vmem:[%s1 + $0x18] sm:$0xff]
  %v21 = vld [vmem:[%s1 + $0x20] sm:$0xff]
  %v22 = vld [vmem:[%s1 + $0x28] sm:$0xff]
  %v23 = vld [vmem:[%s1 + $0x30] sm:$0xff]
  %v24 = vld [vmem:[%s1 + $0x38] sm:$0xff]
  %v25 = vld [vmem:[%s1 + $0x40] sm:$0xff]
  %v26 = vld [vmem:[%s1 + $0x48] sm:$0xff]
  %v27 = vld [vmem:[%s1 + $0x50] sm:$0xff]
  %v28 = vld [vmem:[%s1 + $0x58] sm:$0xff]
  %v29 = vld [vmem:[%s1 + $0x60] sm:$0xff]
  %v30 = vld [vmem:[%s1 + $0x68] sm:$0xff]
  %v31 = vld [vmem:[%s1 + $0x70] sm:$0xff]
  %v32 = vld [vmem:[%s1 + $0x78] sm:$0xff]
  %v33 = vld [vmem:[%s1 + $0x80] sm:$0xff]
  %v34 = vld [vmem:[%s1 + $0x88] sm:$0xff]
  %v35 = vld [vmem:[%s1 + $0x90] sm:$0xff]
  %v36 = vld [vmem:[%s1 + $0x98] sm:$0xff]
  %v37 = vld [vmem:[%s1 + $0xa0] sm:$0xff]
  %v38 = vld [vmem:[%s1 + $0xa8] sm:$0xff]
  %v39 = vld [vmem:[%s1 + $0xb0] sm:$0xff]
  %v40 = vld [vmem:[%s1 + $0xb8] sm:$0xff]
  %v41 = vld [vmem:[%s1 + $0xc0] sm:$0xff]
  %v42 = vld [vmem:[%s1 + $0xc8] sm:$0xff]
  %v43 = vld [vmem:[%s1 + $0xd0] sm:$0xff]
  %v44 = vld [vmem:[%s1 + $0xd8] sm:$0xff]
  %v45 = vld [vmem:[%s1 + $0xe0] sm:$0xff]
  %v46 = vld [vmem:[%s1 + $0xe8] sm:$0xff]
  %v47 = vld [vmem:[%s1 + $0xf0] sm:$0xff]
  %v48 = vld [vmem:[%s1 + $0xf8] sm:$0xff]
  %v49 = vld [vmem:[%s1 + $0x100] sm:$0xff]
  %v50 = vld [vmem:[%s1 + $0x108] sm:$0xff]
  %v51 = vld [vmem:[%s1 + $0x110] sm:$0xff]
  %v52 = vld [vmem:[%s1 + $0x118] sm:$0xff]
  %v53 = vld [vmem:[%s1 + $0x120] sm:$0xff]
  %v54 = vld [vmem:[%s1 + $0x128] sm:$0xff]
  %v55 = vld [vmem:[%s1 + $0x130] sm:$0xff]
  %v56 = vld [vmem:[%s1 + $0x138] sm:$0xff]
  %v57 = vld [vmem:[%s2] sm:$0x1]
  %v59 = vperm.slane %v57, 0
  %vm61 = vcmask 523264
  %v63 = vsel %vm61, %v16, 0
  %65 = vmatpush.msra.mxu0 %v32
  %66 = vmatpush.msra.mxu0 %v31
  %67 = vmatpush.msra.mxu0 %v30
  %68 = vmatpush.msra.mxu0 %v29
  %69 = vmatpush.msra.mxu0 %v28
  %70 = vmatpush.msra.mxu0 %v27
  %71 = vmatpush.msra.mxu0 %v26
  %72 = vmatpush.msra.mxu0 %v25
  %73 = vmatpush.msra.mxu0 %v24
  %74 = vmatpush.msra.mxu0 %v23
  %75 = vmatpush.msra.mxu0 %v22
  %76 = vmatpush.msra.mxu0 %v21
  %77 = vmatpush.msra.mxu0 %v20
  %78 = vmatpush.msra.mxu0 %v19
  %79 = vmatpush.msra.mxu0 %v18
  %80 = vmatpush.msra.mxu0 %v17
  %81 = vmatmul.f32.gmra.mxu0 %v14
  %v82 = vpop.f32.mrf.mxu0
  %v83 = vadd.f32 %v59, %v82
  %84 = vdwg.mxu0
  %85 = vmatpush.msra.mxu0 %v48
  %86 = vmatpush.msra.mxu0 %v47
  %87 = vmatpush.msra.mxu0 %v46
  %88 = vmatpush.msra.mxu0 %v45
  %89 = vmatpush.msra.mxu0 %v44
  %90 = vmatpush.msra.mxu0 %v43
  %91 = vmatpush.msra.mxu0 %v42
  %92 = vmatpush.msra.mxu0 %v41
  %93 = vmatpush.msra.mxu0 %v40
  %94 = vmatpush.msra.mxu0 %v39
  %95 = vmatpush.msra.mxu0 %v38
  %96 = vmatpush.msra.mxu0 %v37
  %97 = vmatpush.msra.mxu0 %v36
  %98 = vmatpush.msra.mxu0 %v35
  %99 = vmatpush.msra.mxu0 %v34
  %100 = vmatpush.msra.mxu0 %v33
  %101 = vmatmul.f32.gmra.mxu0 %v15
  %v102 = vpop.f32.mrf.mxu0
  %v103 = vadd.f32 %v83, %v102
  %104 = vdwg.mxu0
  %105 = vmatpush.msra.mxu0 0.0
  %106 = vmatpush.msra.mxu0 0.0
  %107 = vmatpush.msra.mxu0 0.0
  %108 = vmatpush.msra.mxu0 0.0
  %109 = vmatpush.msra.mxu0 0.0
  %110 = vmatpush.msra.mxu0 0.0
  %111 = vmatpush.msra.mxu0 0.0
  %112 = vmatpush.msra.mxu0 0.0
  %113 = vmatpush.msra.mxu0 %v56
  %114 = vmatpush.msra.mxu0 %v55
  %115 = vmatpush.msra.mxu0 %v54
  %116 = vmatpush.msra.mxu0 %v53
  %117 = vmatpush.msra.mxu0 %v52
  %118 = vmatpush.msra.mxu0 %v51
  %119 = vmatpush.msra.mxu0 %v50
  %120 = vmatpush.msra.mxu0 %v49
  %121 = vmatmul.f32.gmra.mxu0 %v63
  %v122 = vpop.f32.mrf.mxu0
  %v123 = vadd.f32 %v103, %v122
  %124 = vdwg.mxu0
  %v125 = vmax.f32 %v123, 0.0
  %v126 = vlaneseq
  %v127 = vand.u32 %v126, 127
  %vm128 = vcmp.lt.s32.totalorder %v127, 50
  %v129 = vsel %vm128, %v125, -1e+30
  %130 = vmax.xlane.f32.xlu0 %v129
  %v131 = vpop.xlane.xlu0 %130
  %v132 = vsub.f32 %v129, %v131
  %v133 = vmul.f32 %v132, 1.442695
  %v134 = vpow.pop %v133
  %135 = vadd.xlane.f32.xlu0 %v134
  %v136 = vpop.xlane.xlu0 %135
  %v137 = vlog2.pop %v136
  %v138 = vmul.f32 %v137, 0.6931472
  %v139 = vadd.f32 %v138, %v131
  %v140 = vsub.f32 %v129, %v139
  %141 = vst [vmem:[%s3] sm:$0xff] %v140
  // Predicated region
  $region14: #{submodel_forward.5} parent=0 // pred_check
    _
  $region15: #{submodel_forward.5} parent=0 // pred_check_branch
    %143 = sbr.rel (0) target = $region17
  $region16: #{submodel_forward.5} parent=0 // pred_region
    _
  $region17: #{submodel_forward.5} parent=0 // pred_fallthru
    _
  // Predicated region
  $region18: #{submodel_forward.5} parent=0 // pred_check
    _
  $region19: #{submodel_forward.5} parent=0 // pred_check_branch
    %145 = sbr.rel (0) target = $region21
  $region20: #{submodel_forward.5} parent=0 // pred_region
    _
  $region21: #{submodel_forward.5} parent=0 // pred_fallthru
    _

</llo_original>
